<compile_context>
chip_gen: v5e
topology: v5e:2x2
jax: 0.10.0
libtpu: 0.0.40
codegen_flags: <defaults>
</compile_context>

<pallas_src>
import functools
import math

import jax
import jax.numpy as jnp
from jax import lax
from jax.experimental import pallas as pl
from jax.experimental.pallas import tpu as pltpu

_MASK_VALUE = -0.7 * float(jnp.finfo(jnp.float32).max)


def _sublane(dtype):
    return 16 if jnp.dtype(dtype) == jnp.dtype(jnp.bfloat16) else 8


def _pick_block(dim, target, align=1):
    """Largest block <= target that divides `dim` and is a multiple of `align`.

    Falls back to the full dimension (block == full array dim is always legal),
    but refuses to silently pick a huge tile for an awkward size.
    """
    if dim <= target:
        return dim
    blk = target
    while blk >= align and not (dim % blk == 0 and blk % align == 0):
        blk //= 2
    if blk >= align and dim % blk == 0 and blk % align == 0:
        return blk
    assert dim <= 4 * target, (
        f"_pick_block: no aligned tile for dim={dim}, target={target}, align={align}")
    return dim


# --------------------------- tiled linear (matmul) ---------------------------

def _matmul_kernel(x_ref, w_ref, o_ref, acc_ref):
    @pl.when(pl.program_id(2) == 0)
    def _init():
        acc_ref[...] = jnp.zeros_like(acc_ref)

    acc_ref[...] += jnp.dot(x_ref[...], w_ref[...],
                            preferred_element_type=jnp.float32)

    @pl.when(pl.program_id(2) == pl.num_programs(2) - 1)
    def _store():
        o_ref[...] = acc_ref[...].astype(o_ref.dtype)


def pallas_matmul(x, w, *, block_m=512, block_n=512, block_k=512):
    """y = x @ w  (bias-free nn.Linear, weight pre-transposed to [in, out]).

    Tiled + pipelined: grid=(M/bm, N/bn, K/bk), f32 VMEM accumulator, K innermost.
    """
    M, K = x.shape
    K2, N = w.shape
    assert K == K2
    itemsize = jnp.dtype(x.dtype).itemsize
    bm = _pick_block(M, block_m, align=_sublane(x.dtype))
    bn = _pick_block(N, block_n, align=128)
    bk = _pick_block(K, block_k, align=128)
    grid = (M // bm, N // bn, K // bk)
    # Double-buffered x/w/out tiles + f32 accumulator, with headroom; explicit so a
    # tile choice that fits v5e/v6e (128 MiB) can't silently thrash v7x (64 MiB).
    vmem_bytes = 2 * (bm * bk + bk * bn + bm * bn) * itemsize + bm * bn * 4
    vmem_limit = min(max(2 * vmem_bytes, 16 * 1024 * 1024), 32 * 1024 * 1024)
    cost = pl.CostEstimate(flops=2 * M * N * K,
                           transcendentals=0,
                           bytes_accessed=(M * K + K * N + M * N) * itemsize)
    return pl.pallas_call(
        _matmul_kernel,
        out_shape=jax.ShapeDtypeStruct((M, N), x.dtype),
        grid_spec=pltpu.PrefetchScalarGridSpec(
            num_scalar_prefetch=0,
            grid=grid,
            in_specs=[
                pl.BlockSpec((bm, bk), lambda i, j, k: (i, k)),
                pl.BlockSpec((bk, bn), lambda i, j, k: (k, j)),
            ],
            out_specs=pl.BlockSpec((bm, bn), lambda i, j, k: (i, j)),
            scratch_shapes=[pltpu.VMEM((bm, bn), jnp.float32)],
        ),
        compiler_params=pltpu.CompilerParams(
            dimension_semantics=("parallel", "parallel", "arbitrary"),
            vmem_limit_bytes=vmem_limit),
        cost_estimate=cost,
    )(x, w)


# --------------------------- flash attention kernel --------------------------

def _flash_attn_kernel(q_ref, k_ref, v_ref, o_ref, m_sc, l_sc, acc_sc, *,
                       causal, block_q, block_k, num_queries, head_dim,
                       approx_recip):
    # q_ref/o_ref: (block_q, num_queries*D) — the whole GQA query group.
    # k_ref/v_ref: (block_k, D) — the single KV head shared by the group.
    # 1/sqrt(D) is pre-folded into the Q projection weights (no per-step scaling).
    qi = pl.program_id(2)
    ki = pl.program_id(3)

    @pl.when(ki == 0)
    def _init():
        m_sc[...] = jnp.full_like(m_sc, -jnp.inf)
        l_sc[...] = jnp.zeros_like(l_sc)
        acc_sc[...] = jnp.zeros_like(acc_sc)

    def _update(apply_mask):
        k_tile = k_ref[...]
        v_tile = v_ref[...]
        if apply_mask:
            row = qi * block_q + lax.broadcasted_iota(jnp.int32, (block_q, block_k), 0)
            col = ki * block_k + lax.broadcasted_iota(jnp.int32, (block_q, block_k), 1)
            visible = col <= row
        # Static loop over the query heads of the group: one K/V DMA feeds
        # num_queries MXU passes (no repeat_interleave, no re-fetch per head).
        for j in range(num_queries):
            q_j = q_ref[:, j * head_dim:(j + 1) * head_dim]
            s = lax.dot_general(q_j, k_tile, (((1,), (1,)), ((), ())),
                                preferred_element_type=jnp.float32)
            if apply_mask:
                s = jnp.where(visible, s, _MASK_VALUE)
            m_prev = m_sc[j]
            m_new = jnp.maximum(m_prev, jnp.max(s, axis=-1, keepdims=True))
            alpha = jnp.exp(m_prev - m_new)                  # f32 softmax math
            p = jnp.exp(s - m_new)
            l_sc[j] = alpha * l_sc[j] + jnp.sum(p, axis=-1, keepdims=True)
            acc_sc[j] = alpha * acc_sc[j] + jnp.dot(
                p.astype(v_tile.dtype), v_tile,
                preferred_element_type=jnp.float32)
            m_sc[j] = m_new

    if causal:
        # Block-level causal classification; valid for block_q != block_k.
        fully_visible = (ki + 1) * block_k - 1 <= qi * block_q
        not_fully_masked = ki * block_k < (qi + 1) * block_q
        diagonal = jnp.logical_and(not_fully_masked,
                                   jnp.logical_not(fully_visible))
        pl.when(fully_visible)(lambda: _update(apply_mask=False))
        pl.when(diagonal)(lambda: _update(apply_mask=True))
        # Fully-masked blocks: compute skipped here AND their K/V index maps are
        # clamped in the wrapper, so the pipeline never DMAs them.
    else:
        _update(apply_mask=False)

    @pl.when(ki == pl.num_programs(3) - 1)
    def _finalize():
        for j in range(num_queries):
            inv_l = pl.reciprocal(l_sc[j], approx=approx_recip)
            o_ref[:, j * head_dim:(j + 1) * head_dim] = (
                acc_sc[j] * inv_l).astype(o_ref.dtype)


def pallas_flash_attention(qkv, *, batch, seq, num_kv_heads, num_queries,
                           head_dim, causal, block_q=512, block_k=256):
    """Flash attention over a packed QKV activation.

    qkv: [B, S, (Hq + 2*Hkv) * D] with Q heads first, then K heads, then V heads
         (exactly the column layout produced by the fused Q|K|V projection).
    Returns [B, S, Hq * D] — the layout the PyTorch module feeds to self.output.
    GQA sharing comes from BlockSpec index maps (no copies); each KV-head tile is
    reused by the whole query group inside the kernel.
    """
    assert head_dim % 128 == 0, "head_dim must be lane-aligned (multiple of 128)"
    num_q_heads = num_kv_heads * num_queries
    sub = _sublane(qkv.dtype)
    bq = _pick_block(seq, block_q, align=sub)
    bk = _pick_block(seq, block_k, align=sub)
    grid = (batch, num_kv_heads, seq // bq, seq // bk)
    Hq, Hkv = num_q_heads, num_kv_heads

    if causal:
        def kv_seq_block(qi, ki):
            # Clamp fully-masked KV tiles to the last valid block: the block index
            # doesn't change on skipped steps, so Pallas elides their DMA.
            return jnp.minimum(ki, ((qi + 1) * bq - 1) // bk)
    else:
        def kv_seq_block(qi, ki):
            return ki

    q_spec = pl.BlockSpec((None, bq, num_queries * head_dim),
                          lambda b, g, qi, ki: (b, qi, g))
    k_spec = pl.BlockSpec((None, bk, head_dim),
                          lambda b, g, qi, ki: (b, kv_seq_block(qi, ki), Hq + g))
    v_spec = pl.BlockSpec((None, bk, head_dim),
                          lambda b, g, qi, ki: (b, kv_seq_block(qi, ki),
                                                Hq + Hkv + g))
    out_spec = pl.BlockSpec((None, bq, num_queries * head_dim),
                            lambda b, g, qi, ki: (b, qi, g))

    kern = functools.partial(
        _flash_attn_kernel,
        causal=causal,
        block_q=bq,
        block_k=bk,
        num_queries=num_queries,
        head_dim=head_dim,
        approx_recip=(qkv.dtype == jnp.dtype(jnp.bfloat16)),
    )
    itemsize = jnp.dtype(qkv.dtype).itemsize
    causal_div = 2 if causal else 1
    cost = pl.CostEstimate(
        flops=4 * batch * Hq * seq * seq * head_dim // causal_div,
        transcendentals=batch * Hq * seq * seq // causal_div,
        bytes_accessed=(batch * seq * (Hq + 2 * Hkv) * head_dim
                        + batch * seq * Hq * head_dim) * itemsize)
    return pl.pallas_call(
        kern,
        out_shape=jax.ShapeDtypeStruct((batch, seq, num_q_heads * head_dim),
                                       qkv.dtype),
        grid_spec=pltpu.PrefetchScalarGridSpec(
            num_scalar_prefetch=0,
            grid=grid,
            in_specs=[q_spec, k_spec, v_spec],
            out_specs=out_spec,
            scratch_shapes=[
                pltpu.VMEM((num_queries, bq, 1), jnp.float32),         # running max m
                pltpu.VMEM((num_queries, bq, 1), jnp.float32),         # running sum l
                pltpu.VMEM((num_queries, bq, head_dim), jnp.float32),  # output acc
            ],
        ),
        compiler_params=pltpu.CompilerParams(
            dimension_semantics=("parallel", "parallel", "parallel",
                                 "arbitrary")),
        cost_estimate=cost,
    )(qkv, qkv, qkv)


# ------------------------------ module wrapper --------------------------------

def init_modular_attention_params(key, hidden_size, num_heads, num_queries):
    head_dim = hidden_size // num_heads          # factor == 1 (non-differential)
    num_query_heads = num_heads * num_queries
    k1, k2, k3, k4 = jax.random.split(key, 4)
    scale = 1.0 / math.sqrt(hidden_size)
    # nn.Linear weights are [out, in]; stored raw here, prepped once below.
    return {
        "wq": jax.random.normal(k1, (num_query_heads * head_dim, hidden_size), jnp.float32) * scale,
        "wk": jax.random.normal(k2, (num_heads * head_dim, hidden_size), jnp.float32) * scale,
        "wv": jax.random.normal(k3, (num_heads * head_dim, hidden_size), jnp.float32) * scale,
        "wo": jax.random.normal(k4, (hidden_size, num_query_heads * head_dim), jnp.float32) * scale,
    }


def prepare_attention_weights(params, *, num_heads, num_queries,
                              compute_dtype=jnp.bfloat16):
    """One-time parameter prep (hoisted out of the forward pass).

    Fuses Wq|Wk|Wv into a single [hidden, (Hq+2Hkv)*D] matrix, folds 1/sqrt(D)
    into the Q columns, pre-transposes Wo, and casts everything to compute_dtype.
    """
    head_dim = params["wk"].shape[0] // num_heads
    q_scale = 1.0 / math.sqrt(head_dim)
    w_qkv = jnp.concatenate(
        [params["wq"].T * q_scale, params["wk"].T, params["wv"].T], axis=1
    ).astype(compute_dtype)                                  # [hidden, (Hq+2Hkv)*D]
    wo_t = params["wo"].T.astype(compute_dtype)              # [Hq*D, hidden]
    return {"w_qkv": w_qkv, "wo_t": wo_t,
            "head_dim": head_dim, "compute_dtype": compute_dtype}


def modular_attention_forward(inputs, prepped, *, num_heads, num_queries, causal,
                              block_q=512, block_k=256):
    """inputs: [B, S, hidden] -> (output [B, S, hidden], past_key_values=None, aux_loss=0)."""
    B, S, hidden = inputs.shape
    head_dim = prepped["head_dim"]
    dtype = prepped["compute_dtype"]
    Hq = num_heads * num_queries
    Hkv = num_heads

    x2d = inputs.reshape(B * S, hidden).astype(dtype)

    # Fused Q|K|V projection: one tiled matmul, x read from HBM once.
    qkv = pallas_matmul(x2d, prepped["w_qkv"])               # [B*S, (Hq+2Hkv)*D]
    qkv = qkv.reshape(B, S, (Hq + 2 * Hkv) * head_dim)       # free reshape, no transpose

    # Flash attention; per-group slices and GQA sharing come from BlockSpec index maps.
    attn = pallas_flash_attention(
        qkv, batch=B, seq=S, num_kv_heads=Hkv, num_queries=num_queries,
        head_dim=head_dim, causal=causal,
        block_q=block_q, block_k=block_k)                    # [B, S, Hq*D]

    # self.output(output) — attention output is already in [B, S, head*dim] layout.
    out = pallas_matmul(attn.reshape(B * S, Hq * head_dim), prepped["wo_t"])
    return out.reshape(B, S, hidden), None, 0


# ------------------------------ reference ----------------------------------

def _reference(inputs, params, *, num_heads, num_queries, causal):
    B, S, hidden = inputs.shape
    head_dim = params["wk"].shape[0] // num_heads
    num_query_heads = num_heads * num_queries
    q = (inputs @ params["wq"].T).reshape(B, S, num_query_heads, head_dim).transpose(0, 2, 1, 3)
    k = (inputs @ params["wk"].T).reshape(B, S, num_heads, head_dim).transpose(0, 2, 1, 3)
    v = (inputs @ params["wv"].T).reshape(B, S, num_heads, head_dim).transpose(0, 2, 1, 3)
    if num_queries > 1:
        k = jnp.repeat(k, num_queries, axis=1)
        v = jnp.repeat(v, num_queries, axis=1)
    s = jnp.einsum("bhqd,bhkd->bhqk", q, k) / math.sqrt(head_dim)
    if causal:
        mask = jnp.tril(jnp.ones((S, S), bool))
        s = jnp.where(mask, s, jnp.finfo(jnp.float32).min)
    w = jax.nn.softmax(s, axis=-1)
    a = jnp.einsum("bhqk,bhkd->bhqd", w, v).transpose(0, 2, 1, 3).reshape(B, S, -1)
    return a @ params["wo"].T


# -------------------------------- main --------------------------------------

if __name__ == "__main__":
    B, S, HIDDEN = 2, 256, 256
    NUM_HEADS = 2
    CAUSAL = True

    key = jax.random.PRNGKey(0)
    k_in, k_par = jax.random.split(key)
    inputs = jax.random.normal(k_in, (B, S, HIDDEN), jnp.float32)

    # --- config A: MHA (num_queries=1), float32 compute, default blocks, tight check ---
    NQ = 1
    params = init_modular_attention_params(k_par, HIDDEN, NUM_HEADS, NQ)
    prepped = prepare_attention_weights(params, num_heads=NUM_HEADS,
                                        num_queries=NQ,
                                        compute_dtype=jnp.float32)
    out, _cache, _aux = modular_attention_forward(
        inputs, prepped, num_heads=NUM_HEADS, num_queries=NQ, causal=CAUSAL)
    out = jax.block_until_ready(out)
    ref = _reference(inputs, params, num_heads=NUM_HEADS,
                     num_queries=NQ, causal=CAUSAL)
    assert out.shape == (B, S, HIDDEN)
    assert jnp.allclose(out, ref, atol=5e-3, rtol=5e-3), "f32 mismatch vs reference"

    # --- config B: GQA (num_queries=2), bfloat16 compute, small blocks to exercise
    #     multi-step online softmax, causal block skipping / DMA clamping, loose check ---
    NQ2 = 2
    params2 = init_modular_attention_params(
        jax.random.fold_in(k_par, 1), HIDDEN, NUM_HEADS, NQ2)
    prepped2 = prepare_attention_weights(params2, num_heads=NUM_HEADS,
                                         num_queries=NQ2,
                                         compute_dtype=jnp.bfloat16)
    out2, _, _ = modular_attention_forward(
        inputs, prepped2, num_heads=NUM_HEADS, num_queries=NQ2, causal=CAUSAL,
        block_q=128, block_k=64)
    out2 = jax.block_until_ready(out2)
    ref2 = _reference(inputs, params2, num_heads=NUM_HEADS,
                      num_queries=NQ2, causal=CAUSAL)
    rel = jnp.max(jnp.abs(out2.astype(jnp.float32) - ref2)) / (
        jnp.max(jnp.abs(ref2)) + 1e-6)
    assert out2.shape == (B, S, HIDDEN)
    assert float(rel) < 0.1, f"bf16 mismatch vs reference (rel={float(rel):.4f})"

    print("KERNEL_OK")
</pallas_src>

<mosaic_0001>
module attributes {stable_mosaic.version = 11 : i64} {
  func.func @_matmul_kernel(%arg0: i32, %arg1: i32, %arg2: i32, %arg3: memref<512x256xf32, #tpu.memory_space<vmem>>, %arg4: memref<256x256xf32, #tpu.memory_space<vmem>>, %arg5: memref<512x256xf32, #tpu.memory_space<vmem>>, %arg6: memref<512x256xf32, #tpu.memory_space<vmem>>) attributes {dimension_semantics = [#tpu.dimension_semantics<parallel>, #tpu.dimension_semantics<parallel>, #tpu.dimension_semantics<arbitrary>], iteration_bounds = array<i64: 1, 3, 1>, scalar_prefetch = 0 : i64, scratch_operands = 1 : i64, tpu.core_type = #tpu.core_type<tc>, window_params = [{transform_indices = @transform_0, window_bounds = array<i64: 512, 256>}, {transform_indices = @transform_1, window_bounds = array<i64: 256, 256>}, {transform_indices = @transform_2, window_bounds = array<i64: 512, 256>}]} {
    %c0_i32 = arith.constant 0 : i32
    %0 = arith.cmpi eq, %arg2, %c0_i32 : i32
    %1 = arith.extui %0 : i1 to i32
    %c0_i32_0 = arith.constant 0 : i32
    %2 = arith.cmpi ne, %1, %c0_i32_0 : i32
    scf.if %2 {
      %cst_10 = arith.constant 0.000000e+00 : f32
      %12 = vector.broadcast %cst_10 : f32 to vector<512x256xf32>
      %c0_11 = arith.constant 0 : index
      %c0_12 = arith.constant 0 : index
      %13 = vector.load %arg6[%c0_11, %c0_12] : memref<512x256xf32, #tpu.memory_space<vmem>>, vector<512x256xf32>
      tpu.vector_store %arg6[%c0_11, %c0_12], %12 {strides = array<i32>} : memref<512x256xf32, #tpu.memory_space<vmem>>, vector<512x256xf32>,
    } else {
    }
    %c0 = arith.constant 0 : index
    %c0_1 = arith.constant 0 : index
    %3 = vector.load %arg6[%c0, %c0_1] : memref<512x256xf32, #tpu.memory_space<vmem>>, vector<512x256xf32>
    %c0_2 = arith.constant 0 : index
    %c0_3 = arith.constant 0 : index
    %4 = vector.load %arg3[%c0_2, %c0_3] : memref<512x256xf32, #tpu.memory_space<vmem>>, vector<512x256xf32>
    %c0_4 = arith.constant 0 : index
    %c0_5 = arith.constant 0 : index
    %5 = vector.load %arg4[%c0_4, %c0_5] : memref<256x256xf32, #tpu.memory_space<vmem>>, vector<256x256xf32>
    %cst = arith.constant dense<0.000000e+00> : vector<512x256xf32>
    %6 = tpu.matmul %4, %5, %cst {dimension_numbers = #tpu.dot_dimension_numbers<[1], [0], [0], [1], [0, 0, 1, 1], [], []>} : vector<512x256xf32>, vector<256x256xf32>, vector<512x256xf32> -> vector<512x256xf32>
    %7 = arith.addf %3, %6 : vector<512x256xf32>
    %c0_6 = arith.constant 0 : index
    %c0_7 = arith.constant 0 : index
    %8 = vector.load %arg6[%c0_6, %c0_7] : memref<512x256xf32, #tpu.memory_space<vmem>>, vector<512x256xf32>
    tpu.vector_store %arg6[%c0_6, %c0_7], %7 {strides = array<i32>} : memref<512x256xf32, #tpu.memory_space<vmem>>, vector<512x256xf32>,
    %c0_i32_8 = arith.constant 0 : i32
    %9 = arith.cmpi eq, %arg2, %c0_i32_8 : i32
    %10 = arith.extui %9 : i1 to i32
    %c0_i32_9 = arith.constant 0 : i32
    %11 = arith.cmpi ne, %10, %c0_i32_9 : i32
    scf.if %11 {
      %c0_10 = arith.constant 0 : index
      %c0_11 = arith.constant 0 : index
      %12 = vector.load %arg6[%c0_10, %c0_11] : memref<512x256xf32, #tpu.memory_space<vmem>>, vector<512x256xf32>
      %c0_12 = arith.constant 0 : index
      %c0_13 = arith.constant 0 : index
      %13 = vector.load %arg5[%c0_12, %c0_13] : memref<512x256xf32, #tpu.memory_space<vmem>>, vector<512x256xf32>
      tpu.vector_store %arg5[%c0_12, %c0_13], %12 {strides = array<i32>} : memref<512x256xf32, #tpu.memory_space<vmem>>, vector<512x256xf32>,
    } else {
    }
    return
  }
  func.func @transform_0(%arg0: i32, %arg1: i32, %arg2: i32) -> (i32, i32) {
    %c0_i32 = arith.constant 0 : i32
    return %arg0, %arg2 : i32, i32
  }
  func.func @transform_1(%arg0: i32, %arg1: i32, %arg2: i32) -> (i32, i32) {
    %c0_i32 = arith.constant 0 : i32
    return %arg2, %arg1 : i32, i32
  }
  func.func @transform_2(%arg0: i32, %arg1: i32, %arg2: i32) -> (i32, i32) {
    %c0_i32 = arith.constant 0 : i32
    return %arg0, %arg1 : i32, i32
  }
}

</mosaic_0001>

<llo_original>
// kernel: tpu_custom_call.1
$region0: #{tpu_custom_call.1}
  #allocation0 [shape = 'u32[]', space=smem, size = 0x4, offset = 0x4, fixed_abs, tag = 'smem constant byte address 0x4 - core index']
  #allocation1 [shape = 'u32[72,128]{1,0:T(1,128)}', space=vmem, size = 0x9000, scoped, tag = 'internal scratch']
  #allocation2 [shape = 'f32[512,256]{1,0:T(8,128)}', space=vmem, size = 0x80000, scoped, tag = 'scratch operand']
  %s0 = inlined_call_operand.hbm [shape: f32[512,256], index: 0, kind: input, shape index: {}]
  %s1 = inlined_call_operand.hbm [shape: f32[256,768], index: 1, kind: input, shape index: {}]
  %s2 = inlined_call_operand.hbm [shape: f32[512,768], index: 2, kind: output, shape index: {}]
  %s3 = sld [smem:[#allocation0]]
  $region57: #{tpu_custom_call.1} parent=0
    _
  %s5 = ssub.s32 1, %s3
  %s6 = scalar_select 0, %s5, %s3
  $region1: #{tpu_custom_call.1} parent=0
    #allocation3 [shape = 'u8[524288]{0}', space=vmem, size = 0x80000, scoped, tag = 'input window, operand 0, single buffered']
    #allocation4 [shape = 's32[2]{0}', space=sflag, size = 0x8, scoped, tag = 'scoped memory for tpu_custom_call.1']
    #allocation5 [shape = 's32[2]{0}', space=sflag, size = 0x8, scoped, tag = 'scoped memory for tpu_custom_call.1']
    #allocation6 [shape = 'u8[524288]{0}', space=vmem, size = 0x80000, scoped, tag = 'input window, operand 1']
    #allocation7 [shape = 's32[2]{0}', space=sflag, size = 0x8, scoped, tag = 'scoped memory for tpu_custom_call.1']
    #allocation8 [shape = 'u8[1048576]{0}', space=vmem, size = 0x100000, scoped, tag = 'output window, operand 0']
    %7 = vsyncpa [#allocation4], 0
    %8 = vsyncpa [#allocation7], 0
    %s9 = scalar_lea.sflag [#allocation7], 1
    %10 = vsyncpa %s9, 0
    %11 = vsyncpa [#allocation5], 0
    %s12 = scalar_lea.sflag [#allocation5], 1
    %13 = vsyncpa %s12, 0
    loop: start=0, step=1, limit=5
    $region2: #{tpu_custom_call.1} parent=1 // loop_pre_header
      _
    $region3: #{tpu_custom_call.1} parent=1 // loop_header
      %s15 = sphi 0, %s19
      %p16 = scmp.ge.s32.totalorder %s15, 5
      %s22 = sphi 0, %s41
      %s23 = sphi 0, %s37
      %s24 = sphi 0, %s33
      %s25 = sphi 0, %s22
      %s26 = sphi 0, %s23
      %s27 = sphi 0, %s24
      %s28 = sphi 0, %s25
      %s29 = sphi 0, %s26
      %s30 = sphi 0, %s27
      %s46 = sphi 0, %s48
      %s49 = sphi 0, %s46
      %s50 = sphi 0, %s49
      %s66 = sphi 0, %s50
      %s74 = sphi 0, %s76
      %s77 = sphi 0, %s74
      %s78 = sphi 0, %s77
      %s94 = sphi 0, %s78
      %s102 = sphi 0, %s104
      %s105 = sphi 0, %s102
      %s106 = sphi 0, %s105
      %s122 = sphi 0, %s106
    $region4: #{tpu_custom_call.1} parent=1 // loop_header_branch
      %18 = sbr.rel (%p16) target = $region8
    $region5: #{tpu_custom_call.1} parent=1 // loop_body
      %s20 = ssub.s32 %s15, 1
      %s21 = ssub.s32 %s15, 2
      %s31 = sadd.s32 1, %s24
      %p32 = scmp.ge.s32.totalorder %s31, 1
      %s33 = scalar_select %p32, 0, %s31
      %s34 = sadd.s32 1, %s23
      %s35 = scalar_select %p32, %s34, %s23
      %p36 = scmp.ge.s32.totalorder %s35, 3
      %s37 = scalar_select %p36, 0, %s35
      %s38 = sadd.s32 1, %s22
      %s39 = scalar_select %p36, %s38, %s22
      %p40 = scmp.ge.s32.totalorder %s39, 1
      %s41 = scalar_select %p40, 0, %s39
      %s42 = ssub.s32 %s22, %s41
      %s43 = ssub.s32 %s24, %s33
      %s44 = sor.u32 %s42, %s43
      %p45 = scmp.eq.s32.totalorder %s44, 0
      %s47 = sadd.s32 %s46, 1
      %s48 = scalar_select %p45, %s46, %s47
      %p51 = pneg %p45
      %p52 = scmp.eq.s32.totalorder %s15, 2
      %p53 = por %p51, %p52
      %p54 = scmp.ne.s32.totalorder %s46, %s49
      %p55 = scmp.eq.s32.totalorder %s15, 0
      %p56 = por %p54, %p55
      %p57 = scmp.ne.s32.totalorder %s46, %s49
      %p58 = scmp.eq.s32.totalorder %s20, 2
      %p59 = por %p57, %p58
      %p60 = scmp.ne.s32.totalorder %s49, %s50
      %p61 = scmp.eq.s32.totalorder %s20, 0
      %p62 = por %p60, %p61
      %p63 = scmp.ne.s32.totalorder %s49, %s50
      %p64 = scmp.eq.s32.totalorder %s21, 2
      %p65 = por %p63, %p64
      %p67 = scmp.ne.s32.totalorder %s50, %s66
      %p68 = scmp.eq.s32.totalorder %s21, 0
      %p69 = por %p67, %p68
      %s70 = ssub.s32 %s24, %s33
      %s71 = ssub.s32 %s23, %s37
      %s72 = sor.u32 %s70, %s71
      %p73 = scmp.eq.s32.totalorder %s72, 0
      %s75 = sadd.s32 %s74, 1
      %s76 = scalar_select %p73, %s74, %s75
      %p79 = pneg %p73
      %p80 = scmp.eq.s32.totalorder %s15, 2
      %p81 = por %p79, %p80
      %p82 = scmp.ne.s32.totalorder %s74, %s77
      %p83 = scmp.eq.s32.totalorder %s15, 0
      %p84 = por %p82, %p83
      %p85 = scmp.ne.s32.totalorder %s74, %s77
      %p86 = scmp.eq.s32.totalorder %s20, 2
      %p87 = por %p85, %p86
      %p88 = scmp.ne.s32.totalorder %s77, %s78
      %p89 = scmp.eq.s32.totalorder %s20, 0
      %p90 = por %p88, %p89
      %p91 = scmp.ne.s32.totalorder %s77, %s78
      %p92 = scmp.eq.s32.totalorder %s21, 2
      %p93 = por %p91, %p92
      %p95 = scmp.ne.s32.totalorder %s78, %s94
      %p96 = scmp.eq.s32.totalorder %s21, 0
      %p97 = por %p95, %p96
      %s98 = ssub.s32 %s22, %s41
      %s99 = ssub.s32 %s23, %s37
      %s100 = sor.u32 %s98, %s99
      %p101 = scmp.eq.s32.totalorder %s100, 0
      %s103 = sadd.s32 %s102, 1
      %s104 = scalar_select %p101, %s102, %s103
      %p107 = pneg %p101
      %p108 = scmp.eq.s32.totalorder %s15, 2
      %p109 = por %p107, %p108
      %p110 = scmp.ne.s32.totalorder %s102, %s105
      %p111 = scmp.eq.s32.totalorder %s15, 0
      %p112 = por %p110, %p111
      %p113 = scmp.ne.s32.totalorder %s102, %s105
      %p114 = scmp.eq.s32.totalorder %s20, 2
      %p115 = por %p113, %p114
      %p116 = scmp.ne.s32.totalorder %s105, %s106
      %p117 = scmp.eq.s32.totalorder %s20, 0
      %p118 = por %p116, %p117
      %p119 = scmp.ne.s32.totalorder %s105, %s106
      %p120 = scmp.eq.s32.totalorder %s21, 2
      %p121 = por %p119, %p120
      %p123 = scmp.ne.s32.totalorder %s106, %s122
      %p124 = scmp.eq.s32.totalorder %s21, 0
      %p125 = por %p123, %p124
      %p126 = scmp.le.s32.totalorder 1, %s15
      %p127 = scmp.lt.s32.totalorder %s15, 4
      %p128 = pnand %p126, %p127
      %p129 = pneg %p128
      // Predicated region
      $region9: #{tpu_custom_call.1} parent=5 // pred_check
        _
      $region10: #{tpu_custom_call.1} parent=5 // pred_check_branch
        %131 = sbr.rel (%p128) target = $region12
      $region11: #{tpu_custom_call.1} parent=5 // pred_region
        %s132 = ssub.s32 %s15, 1
        // Predicated region
        $region13: #{tpu_custom_call.1} parent=11 // pred_check
          %p133 = pneg %p62
        $region14: #{tpu_custom_call.1} parent=11 // pred_check_branch
          %135 = sbr.rel (%p133) target = $region16
        $region15: #{tpu_custom_call.1} parent=11 // pred_region
          %s136 = smul.u32 64, %s25
          %s137 = smul.u32 2, %s27
          %139 = vsyncadd [#allocation4], 0
          %s140 = smul.addr %s136, 2
          %s141 = sadd.s32 %s137, %s140
          %s142 = smul.addr %s141, 8
          %s143 = scalar_lea.hbm %s0, %s142
          %s144 = sshll.u32 %s143, 4
          %s145 = int_to_ptr.hbm [resolvable:$true] %s144
          %s146 = sshll.u32 [#allocation3], 4
          %s147 = int_to_ptr.vmem [resolvable:$true] %s146
          %152 = dma.hbm_to_vmem [thread:$0]  %s145, 16384, %s147, [#allocation4], 256, 256, 16
        $region16: #{tpu_custom_call.1} parent=11 // pred_fallthru
          _
      $region12: #{tpu_custom_call.1} parent=5 // pred_fallthru
        _
      %p153 = scmp.lt.s32.totalorder %s15, 3
      // Predicated region
      $region17: #{tpu_custom_call.1} parent=5 // pred_check
        %p154 = pneg %p153
      $region18: #{tpu_custom_call.1} parent=5 // pred_check_branch
        %156 = sbr.rel (%p154) target = $region20
      $region19: #{tpu_custom_call.1} parent=5 // pred_region
        // Predicated region
        $region21: #{tpu_custom_call.1} parent=19 // pred_check
          %p157 = pneg %p84
        $region22: #{tpu_custom_call.1} parent=19 // pred_check_branch
          %159 = sbr.rel (%p157) target = $region24
        $region23: #{tpu_custom_call.1} parent=19 // pred_region
          %s160 = sand.u32 %s74, 1
          %s161 = scalar_lea.sflag [#allocation7], %s160
          %s162 = sand.u32 %s74, 1
          %s163 = smul.addr %s162, 512
          %s164 = scalar_lea.vmem [#allocation6], %s163
          %s165 = smul.u32 32, %s24
          %s166 = smul.u32 2, %s23
          %168 = vsyncadd %s161, 0
          %s169 = smul.addr %s165, 6
          %s170 = sadd.s32 %s166, %s169
          %s171 = smul.addr %s170, 8
          %s172 = scalar_lea.hbm %s1, %s171
          %s173 = sshll.u32 %s172, 4
          %s174 = int_to_ptr.hbm [resolvable:$true] %s173
          %s175 = sshll.u32 %s164, 4
          %s176 = int_to_ptr.vmem [resolvable:$true] %s175
          %181 = dma.hbm_to_vmem [thread:$0]  %s174, 8192, %s176, %s161, 768, 256, 16
        $region24: #{tpu_custom_call.1} parent=19 // pred_fallthru
          _
      $region20: #{tpu_custom_call.1} parent=5 // pred_fallthru
        _
      %p182 = scmp.le.s32.totalorder 1, %s15
      %p183 = scmp.lt.s32.totalorder %s15, 4
      %p184 = pnand %p182, %p183
      %p185 = pneg %p184
      // Predicated region
      $region25: #{tpu_custom_call.1} parent=5 // pred_check
        _
      $region26: #{tpu_custom_call.1} parent=5 // pred_check_branch
        %187 = sbr.rel (%p184) target = $region28
      $region27: #{tpu_custom_call.1} parent=5 // pred_region
        %s188 = ssub.s32 %s15, 1
        // Predicated region
        $region29: #{tpu_custom_call.1} parent=27 // pred_check
          %p189 = pneg %p62
        $region30: #{tpu_custom_call.1} parent=27 // pred_check_branch
          %191 = sbr.rel (%p189) target = $region32
        $region31: #{tpu_custom_call.1} parent=27 // pred_region
          %193 = dma.done [#allocation4], 16384
        $region32: #{tpu_custom_call.1} parent=27 // pred_fallthru
          _
        %s194 = sand.u32 %s77, 1
        %s195 = scalar_lea.sflag [#allocation7], %s194
        %s196 = sand.u32 %s77, 1
        %s197 = smul.addr %s196, 512
        %s198 = scalar_lea.vmem [#allocation6], %s197
        // Predicated region
        $region33: #{tpu_custom_call.1} parent=27 // pred_check
          %p199 = pneg %p90
        $region34: #{tpu_custom_call.1} parent=27 // pred_check_branch
          %201 = sbr.rel (%p199) target = $region36
        $region35: #{tpu_custom_call.1} parent=27 // pred_region
          %203 = dma.done %s195, 8192
        $region36: #{tpu_custom_call.1} parent=27 // pred_fallthru
          _
        %p204 = pneg %p62
        %p205 = pneg %p59
        %s206 = sand.u32 %s77, 1
        %s207 = scalar_lea.sflag [#allocation7], %s206
        %s208 = sand.u32 %s77, 1
        %s209 = smul.addr %s208, 512
        %s210 = scalar_lea.vmem [#allocation6], %s209
        %p211 = pneg %p90
        %p212 = pneg %p87
        %p213 = pneg %p118
        %p214 = pneg %p115
        %s215 = sand.u32 %s105, 1
        %s216 = scalar_lea.sflag [#allocation5], %s215
        %s217 = sand.u32 %s105, 1
        %s218 = smul.addr %s217, 1024
        %s219 = scalar_lea.vmem [#allocation8], %s218
        %s220 = smul.u32 64, %s25
        %s221 = smul.u32 2, %s27
        %s222 = smul.u32 32, %s27
        %s223 = smul.u32 2, %s26
        %s224 = smul.u32 64, %s25
        %s225 = smul.u32 2, %s26
        %p226 = scmp.eq.s32.totalorder %s27, 0
        // Predicated region
        $region37: #{tpu_custom_call.1} parent=27 // pred_check
          %p227 = pneg %p226
        $region38: #{tpu_custom_call.1} parent=27 // pred_check_branch
          %229 = sbr.rel (%p227) target = $region40
        $region39: #{tpu_custom_call.1} parent=27 // pred_region
          %230 = vst [vmem:[#allocation2] sm:$0xff] 0.0
          %231 = vst [vmem:[#allocation2 + $0x8] sm:$0xff] 0.0
          %232 = vst [vmem:[#allocation2 + $0x10] sm:$0xff] 0.0
          %233 = vst [vmem:[#allocation2 + $0x18] sm:$0xff] 0.0
          %234 = vst [vmem:[#allocation2 + $0x20] sm:$0xff] 0.0
          %235 = vst [vmem:[#allocation2 + $0x28] sm:$0xff] 0.0
          %236 = vst [vmem:[#allocation2 + $0x30] sm:$0xff] 0.0
          %237 = vst [vmem:[#allocation2 + $0x38] sm:$0xff] 0.0
          %238 = vst [vmem:[#allocation2 + $0x40] sm:$0xff] 0.0
          %239 = vst [vmem:[#allocation2 + $0x48] sm:$0xff] 0.0
          %240 = vst [vmem:[#allocation2 + $0x50] sm:$0xff] 0.0
          %241 = vst [vmem:[#allocation2 + $0x58] sm:$0xff] 0.0
          %242 = vst [vmem:[#allocation2 + $0x60] sm:$0xff] 0.0
          %243 = vst [vmem:[#allocation2 + $0x68] sm:$0xff] 0.0
          %244 = vst [vmem:[#allocation2 + $0x70] sm:$0xff] 0.0
          %245 = vst [vmem:[#allocation2 + $0x78] sm:$0xff] 0.0
          %246 = vst [vmem:[#allocation2 + $0x80] sm:$0xff] 0.0
          %247 = vst [vmem:[#allocation2 + $0x88] sm:$0xff] 0.0
          %248 = vst [vmem:[#allocation2 + $0x90] sm:$0xff] 0.0
          %249 = vst [vmem:[#allocation2 + $0x98] sm:$0xff] 0.0
          %250 = vst [vmem:[#allocation2 + $0xa0] sm:$0xff] 0.0
          %251 = vst [vmem:[#allocation2 + $0xa8] sm:$0xff] 0.0
          %252 = vst [vmem:[#allocation2 + $0xb0] sm:$0xff] 0.0
          %253 = vst [vmem:[#allocation2 + $0xb8] sm:$0xff] 0.0
          %254 = vst [vmem:[#allocation2 + $0xc0] sm:$0xff] 0.0
          %255 = vst [vmem:[#allocation2 + $0xc8] sm:$0xff] 0.0
          %256 = vst [vmem:[#allocation2 + $0xd0] sm:$0xff] 0.0
          %257 = vst [vmem:[#allocation2 + $0xd8] sm:$0xff] 0.0
          %258 = vst [vmem:[#allocation2 + $0xe0] sm:$0xff] 0.0
          %259 = vst [vmem:[#allocation2 + $0xe8] sm:$0xff] 0.0
          %260 = vst [vmem:[#allocation2 + $0xf0] sm:$0xff] 0.0
          %261 = vst [vmem:[#allocation2 + $0xf8] sm:$0xff] 0.0
          %262 = vst [vmem:[#allocation2 + $0x100] sm:$0xff] 0.0
          %263 = vst [vmem:[#allocation2 + $0x108] sm:$0xff] 0.0
          %264 = vst [vmem:[#allocation2 + $0x110] sm:$0xff] 0.0
          %265 = vst [vmem:[#allocation2 + $0x118] sm:$0xff] 0.0
          %266 = vst [vmem:[#allocation2 + $0x120] sm:$0xff] 0.0
          %267 = vst [vmem:[#allocation2 + $0x128] sm:$0xff] 0.0
          %268 = vst [vmem:[#allocation2 + $0x130] sm:$0xff] 0.0
          %269 = vst [vmem:[#allocation2 + $0x138] sm:$0xff] 0.0
          %270 = vst [vmem:[#allocation2 + $0x140] sm:$0xff] 0.0
          %271 = vst [vmem:[#allocation2 + $0x148] sm:$0xff] 0.0
          %272 = vst [vmem:[#allocation2 + $0x150] sm:$0xff] 0.0
          %273 = vst [vmem:[#allocation2 + $0x158] sm:$0xff] 0.0
          %274 = vst [vmem:[#allocation2 + $0x160] sm:$0xff] 0.0
          %275 = vst [vmem:[#allocation2 + $0x168] sm:$0xff] 0.0
          %276 = vst [vmem:[#allocation2 + $0x170] sm:$0xff] 0.0
          %277 = vst [vmem:[#allocation2 + $0x178] sm:$0xff] 0.0
          %278 = vst [vmem:[#allocation2 + $0x180] sm:$0xff] 0.0
          %279 = vst [vmem:[#allocation2 + $0x188] sm:$0xff] 0.0
          %280 = vst [vmem:[#allocation2 + $0x190] sm:$0xff] 0.0
          %281 = vst [vmem:[#allocation2 + $0x198] sm:$0xff] 0.0
          %282 = vst [vmem:[#allocation2 + $0x1a0] sm:$0xff] 0.0
          %283 = vst [vmem:[#allocation2 + $0x1a8] sm:$0xff] 0.0
          %284 = vst [vmem:[#allocation2 + $0x1b0] sm:$0xff] 0.0
          %285 = vst [vmem:[#allocation2 + $0x1b8] sm:$0xff] 0.0
          %286 = vst [vmem:[#allocation2 + $0x1c0] sm:$0xff] 0.0
          %287 = vst [vmem:[#allocation2 + $0x1c8] sm:$0xff] 0.0
          %288 = vst [vmem:[#allocation2 + $0x1d0] sm:$0xff] 0.0
          %289 = vst [vmem:[#allocation2 + $0x1d8] sm:$0xff] 0.0
          %290 = vst [vmem:[#allocation2 + $0x1e0] sm:$0xff] 0.0
          %291 = vst [vmem:[#allocation2 + $0x1e8] sm:$0xff] 0.0
          %292 = vst [vmem:[#allocation2 + $0x1f0] sm:$0xff] 0.0
          %293 = vst [vmem:[#allocation2 + $0x1f8] sm:$0xff] 0.0
          %294 = vst [vmem:[#allocation2 + $0x200] sm:$0xff] 0.0
          %295 = vst [vmem:[#allocation2 + $0x208] sm:$0xff] 0.0
          %296 = vst [vmem:[#allocation2 + $0x210] sm:$0xff] 0.0
          %297 = vst [vmem:[#allocation2 + $0x218] sm:$0xff] 0.0
          %298 = vst [vmem:[#allocation2 + $0x220] sm:$0xff] 0.0
          %299 = vst [vmem:[#allocation2 + $0x228] sm:$0xff] 0.0
          %300 = vst [vmem:[#allocation2 + $0x230] sm:$0xff] 0.0
          %301 = vst [vmem:[#allocation2 + $0x238] sm:$0xff] 0.0
          %302 = vst [vmem:[#allocation2 + $0x240] sm:$0xff] 0.0
          %303 = vst [vmem:[#allocation2 + $0x248] sm:$0xff] 0.0
          %304 = vst [vmem:[#allocation2 + $0x250] sm:$0xff] 0.0
          %305 = vst [vmem:[#allocation2 + $0x258] sm:$0xff] 0.0
          %306 = vst [vmem:[#allocation2 + $0x260] sm:$0xff] 0.0
          %307 = vst [vmem:[#allocation2 + $0x268] sm:$0xff] 0.0
          %308 = vst [vmem:[#allocation2 + $0x270] sm:$0xff] 0.0
          %309 = vst [vmem:[#allocation2 + $0x278] sm:$0xff] 0.0
          %310 = vst [vmem:[#allocation2 + $0x280] sm:$0xff] 0.0
          %311 = vst [vmem:[#allocation2 + $0x288] sm:$0xff] 0.0
          %312 = vst [vmem:[#allocation2 + $0x290] sm:$0xff] 0.0
          %313 = vst [vmem:[#allocation2 + $0x298] sm:$0xff] 0.0
          %314 = vst [vmem:[#allocation2 + $0x2a0] sm:$0xff] 0.0
          %315 = vst [vmem:[#allocation2 + $0x2a8] sm:$0xff] 0.0
          %316 = vst [vmem:[#allocation2 + $0x2b0] sm:$0xff] 0.0
          %317 = vst [vmem:[#allocation2 + $0x2b8] sm:$0xff] 0.0
          %318 = vst [vmem:[#allocation2 + $0x2c0] sm:$0xff] 0.0
          %319 = vst [vmem:[#allocation2 + $0x2c8] sm:$0xff] 0.0
          %320 = vst [vmem:[#allocation2 + $0x2d0] sm:$0xff] 0.0
          %321 = vst [vmem:[#allocation2 + $0x2d8] sm:$0xff] 0.0
          %322 = vst [vmem:[#allocation2 + $0x2e0] sm:$0xff] 0.0
          %323 = vst [vmem:[#allocation2 + $0x2e8] sm:$0xff] 0.0
          %324 = vst [vmem:[#allocation2 + $0x2f0] sm:$0xff] 0.0
          %325 = vst [vmem:[#allocation2 + $0x2f8] sm:$0xff] 0.0
          %326 = vst [vmem:[#allocation2 + $0x300] sm:$0xff] 0.0
          %327 = vst [vmem:[#allocation2 + $0x308] sm:$0xff] 0.0
          %328 = vst [vmem:[#allocation2 + $0x310] sm:$0xff] 0.0
          %329 = vst [vmem:[#allocation2 + $0x318] sm:$0xff] 0.0
          %330 = vst [vmem:[#allocation2 + $0x320] sm:$0xff] 0.0
          %331 = vst [vmem:[#allocation2 + $0x328] sm:$0xff] 0.0
          %332 = vst [vmem:[#allocation2 + $0x330] sm:$0xff] 0.0
          %333 = vst [vmem:[#allocation2 + $0x338] sm:$0xff] 0.0
          %334 = vst [vmem:[#allocation2 + $0x340] sm:$0xff] 0.0
          %335 = vst [vmem:[#allocation2 + $0x348] sm:$0xff] 0.0
          %336 = vst [vmem:[#allocation2 + $0x350] sm:$0xff] 0.0
          %337 = vst [vmem:[#allocation2 + $0x358] sm:$0xff] 0.0
          %338 = vst [vmem:[#allocation2 + $0x360] sm:$0xff] 0.0
          %339 = vst [vmem:[#allocation2 + $0x368] sm:$0xff] 0.0
          %340 = vst [vmem:[#allocation2 + $0x370] sm:$0xff] 0.0
          %341 = vst [vmem:[#allocation2 + $0x378] sm:$0xff] 0.0
          %342 = vst [vmem:[#allocation2 + $0x380] sm:$0xff] 0.0
          %343 = vst [vmem:[#allocation2 + $0x388] sm:$0xff] 0.0
          %344 = vst [vmem:[#allocation2 + $0x390] sm:$0xff] 0.0
          %345 = vst [vmem:[#allocation2 + $0x398] sm:$0xff] 0.0
          %346 = vst [vmem:[#allocation2 + $0x3a0] sm:$0xff] 0.0
          %347 = vst [vmem:[#allocation2 + $0x3a8] sm:$0xff] 0.0
          %348 = vst [vmem:[#allocation2 + $0x3b0] sm:$0xff] 0.0
          %349 = vst [vmem:[#allocation2 + $0x3b8] sm:$0xff] 0.0
          %350 = vst [vmem:[#allocation2 + $0x3c0] sm:$0xff] 0.0
          %351 = vst [vmem:[#allocation2 + $0x3c8] sm:$0xff] 0.0
          %352 = vst [vmem:[#allocation2 + $0x3d0] sm:$0xff] 0.0
          %353 = vst [vmem:[#allocation2 + $0x3d8] sm:$0xff] 0.0
          %354 = vst [vmem:[#allocation2 + $0x3e0] sm:$0xff] 0.0
          %355 = vst [vmem:[#allocation2 + $0x3e8] sm:$0xff] 0.0
          %356 = vst [vmem:[#allocation2 + $0x3f0] sm:$0xff] 0.0
          %357 = vst [vmem:[#allocation2 + $0x3f8] sm:$0xff] 0.0
        $region40: #{tpu_custom_call.1} parent=27 // pred_fallthru
          _
        %v358 = vld [vmem:[#allocation2] sm:$0xff]
        %v359 = vld [vmem:[#allocation2 + $0x8] sm:$0xff]
        %v360 = vld [vmem:[#allocation2 + $0x10] sm:$0xff]
        %v361 = vld [vmem:[#allocation2 + $0x18] sm:$0xff]
        %v362 = vld [vmem:[#allocation2 + $0x20] sm:$0xff]
        %v363 = vld [vmem:[#allocation2 + $0x28] sm:$0xff]
        %v364 = vld [vmem:[#allocation2 + $0x30] sm:$0xff]
        %v365 = vld [vmem:[#allocation2 + $0x38] sm:$0xff]
        %v366 = vld [vmem:[#allocation2 + $0x40] sm:$0xff]
        %v367 = vld [vmem:[#allocation2 + $0x48] sm:$0xff]
        %v368 = vld [vmem:[#allocation2 + $0x50] sm:$0xff]
        %v369 = vld [vmem:[#allocation2 + $0x58] sm:$0xff]
        %v370 = vld [vmem:[#allocation2 + $0x60] sm:$0xff]
        %v371 = vld [vmem:[#allocation2 + $0x68] sm:$0xff]
        %v372 = vld [vmem:[#allocation2 + $0x70] sm:$0xff]
        %v373 = vld [vmem:[#allocation2 + $0x78] sm:$0xff]
        %v374 = vld [vmem:[#allocation2 + $0x80] sm:$0xff]
        %v375 = vld [vmem:[#allocation2 + $0x88] sm:$0xff]
        %v376 = vld [vmem:[#allocation2 + $0x90] sm:$0xff]
        %v377 = vld [vmem:[#allocation2 + $0x98] sm:$0xff]
        %v378 = vld [vmem:[#allocation2 + $0xa0] sm:$0xff]
        %v379 = vld [vmem:[#allocation2 + $0xa8] sm:$0xff]
        %v380 = vld [vmem:[#allocation2 + $0xb0] sm:$0xff]
        %v381 = vld [vmem:[#allocation2 + $0xb8] sm:$0xff]
        %v382 = vld [vmem:[#allocation2 + $0xc0] sm:$0xff]
        %v383 = vld [vmem:[#allocation2 + $0xc8] sm:$0xff]
        %v384 = vld [vmem:[#allocation2 + $0xd0] sm:$0xff]
        %v385 = vld [vmem:[#allocation2 + $0xd8] sm:$0xff]
        %v386 = vld [vmem:[#allocation2 + $0xe0] sm:$0xff]
        %v387 = vld [vmem:[#allocation2 + $0xe8] sm:$0xff]
        %v388 = vld [vmem:[#allocation2 + $0xf0] sm:$0xff]
        %v389 = vld [vmem:[#allocation2 + $0xf8] sm:$0xff]
        %v390 = vld [vmem:[#allocation2 + $0x100] sm:$0xff]
        %v391 = vld [vmem:[#allocation2 + $0x108] sm:$0xff]
        %v392 = vld [vmem:[#allocation2 + $0x110] sm:$0xff]
        %v393 = vld [vmem:[#allocation2 + $0x118] sm:$0xff]
        %v394 = vld [vmem:[#allocation2 + $0x120] sm:$0xff]
        %v395 = vld [vmem:[#allocation2 + $0x128] sm:$0xff]
        %v396 = vld [vmem:[#allocation2 + $0x130] sm:$0xff]
        %v397 = vld [vmem:[#allocation2 + $0x138] sm:$0xff]
        %v398 = vld [vmem:[#allocation2 + $0x140] sm:$0xff]
        %v399 = vld [vmem:[#allocation2 + $0x148] sm:$0xff]
        %v400 = vld [vmem:[#allocation2 + $0x150] sm:$0xff]
        %v401 = vld [vmem:[#allocation2 + $0x158] sm:$0xff]
        %v402 = vld [vmem:[#allocation2 + $0x160] sm:$0xff]
        %v403 = vld [vmem:[#allocation2 + $0x168] sm:$0xff]
        %v404 = vld [vmem:[#allocation2 + $0x170] sm:$0xff]
        %v405 = vld [vmem:[#allocation2 + $0x178] sm:$0xff]
        %v406 = vld [vmem:[#allocation2 + $0x180] sm:$0xff]
        %v407 = vld [vmem:[#allocation2 + $0x188] sm:$0xff]
        %v408 = vld [vmem:[#allocation2 + $0x190] sm:$0xff]
        %v409 = vld [vmem:[#allocation2 + $0x198] sm:$0xff]
        %v410 = vld [vmem:[#allocation2 + $0x1a0] sm:$0xff]
        %v411 = vld [vmem:[#allocation2 + $0x1a8] sm:$0xff]
        %v412 = vld [vmem:[#allocation2 + $0x1b0] sm:$0xff]
        %v413 = vld [vmem:[#allocation2 + $0x1b8] sm:$0xff]
        %v414 = vld [vmem:[#allocation2 + $0x1c0] sm:$0xff]
        %v415 = vld [vmem:[#allocation2 + $0x1c8] sm:$0xff]
        %v416 = vld [vmem:[#allocation2 + $0x1d0] sm:$0xff]
        %v417 = vld [vmem:[#allocation2 + $0x1d8] sm:$0xff]
        %v418 = vld [vmem:[#allocation2 + $0x1e0] sm:$0xff]
        %v419 = vld [vmem:[#allocation2 + $0x1e8] sm:$0xff]
        %v420 = vld [vmem:[#allocation2 + $0x1f0] sm:$0xff]
        %v421 = vld [vmem:[#allocation2 + $0x1f8] sm:$0xff]
        %v422 = vld [vmem:[#allocation2 + $0x200] sm:$0xff]
        %v423 = vld [vmem:[#allocation2 + $0x208] sm:$0xff]
        %v424 = vld [vmem:[#allocation2 + $0x210] sm:$0xff]
        %v425 = vld [vmem:[#allocation2 + $0x218] sm:$0xff]
        %v426 = vld [vmem:[#allocation2 + $0x220] sm:$0xff]
        %v427 = vld [vmem:[#allocation2 + $0x228] sm:$0xff]
        %v428 = vld [vmem:[#allocation2 + $0x230] sm:$0xff]
        %v429 = vld [vmem:[#allocation2 + $0x238] sm:$0xff]
        %v430 = vld [vmem:[#allocation2 + $0x240] sm:$0xff]
        %v431 = vld [vmem:[#allocation2 + $0x248] sm:$0xff]
        %v432 = vld [vmem:[#allocation2 + $0x250] sm:$0xff]
        %v433 = vld [vmem:[#allocation2 + $0x258] sm:$0xff]
        %v434 = vld [vmem:[#allocation2 + $0x260] sm:$0xff]
        %v435 = vld [vmem:[#allocation2 + $0x268] sm:$0xff]
        %v436 = vld [vmem:[#allocation2 + $0x270] sm:$0xff]
        %v437 = vld [vmem:[#allocation2 + $0x278] sm:$0xff]
        %v438 = vld [vmem:[#allocation2 + $0x280] sm:$0xff]
        %v439 = vld [vmem:[#allocation2 + $0x288] sm:$0xff]
        %v440 = vld [vmem:[#allocation2 + $0x290] sm:$0xff]
        %v441 = vld [vmem:[#allocation2 + $0x298] sm:$0xff]
        %v442 = vld [vmem:[#allocation2 + $0x2a0] sm:$0xff]
        %v443 = vld [vmem:[#allocation2 + $0x2a8] sm:$0xff]
        %v444 = vld [vmem:[#allocation2 + $0x2b0] sm:$0xff]
        %v445 = vld [vmem:[#allocation2 + $0x2b8] sm:$0xff]
        %v446 = vld [vmem:[#allocation2 + $0x2c0] sm:$0xff]
        %v447 = vld [vmem:[#allocation2 + $0x2c8] sm:$0xff]
        %v448 = vld [vmem:[#allocation2 + $0x2d0] sm:$0xff]
        %v449 = vld [vmem:[#allocation2 + $0x2d8] sm:$0xff]
        %v450 = vld [vmem:[#allocation2 + $0x2e0] sm:$0xff]
        %v451 = vld [vmem:[#allocation2 + $0x2e8] sm:$0xff]
        %v452 = vld [vmem:[#allocation2 + $0x2f0] sm:$0xff]
        %v453 = vld [vmem:[#allocation2 + $0x2f8] sm:$0xff]
        %v454 = vld [vmem:[#allocation2 + $0x300] sm:$0xff]
        %v455 = vld [vmem:[#allocation2 + $0x308] sm:$0xff]
        %v456 = vld [vmem:[#allocation2 + $0x310] sm:$0xff]
        %v457 = vld [vmem:[#allocation2 + $0x318] sm:$0xff]
        %v458 = vld [vmem:[#allocation2 + $0x320] sm:$0xff]
        %v459 = vld [vmem:[#allocation2 + $0x328] sm:$0xff]
        %v460 = vld [vmem:[#allocation2 + $0x330] sm:$0xff]
        %v461 = vld [vmem:[#allocation2 + $0x338] sm:$0xff]
        %v462 = vld [vmem:[#allocation2 + $0x340] sm:$0xff]
        %v463 = vld [vmem:[#allocation2 + $0x348] sm:$0xff]
        %v464 = vld [vmem:[#allocation2 + $0x350] sm:$0xff]
        %v465 = vld [vmem:[#allocation2 + $0x358] sm:$0xff]
        %v466 = vld [vmem:[#allocation2 + $0x360] sm:$0xff]
        %v467 = vld [vmem:[#allocation2 + $0x368] sm:$0xff]
        %v468 = vld [vmem:[#allocation2 + $0x370] sm:$0xff]
        %v469 = vld [vmem:[#allocation2 + $0x378] sm:$0xff]
        %v470 = vld [vmem:[#allocation2 + $0x380] sm:$0xff]
        %v471 = vld [vmem:[#allocation2 + $0x388] sm:$0xff]
        %v472 = vld [vmem:[#allocation2 + $0x390] sm:$0xff]
        %v473 = vld [vmem:[#allocation2 + $0x398] sm:$0xff]
        %v474 = vld [vmem:[#allocation2 + $0x3a0] sm:$0xff]
        %v475 = vld [vmem:[#allocation2 + $0x3a8] sm:$0xff]
        %v476 = vld [vmem:[#allocation2 + $0x3b0] sm:$0xff]
        %v477 = vld [vmem:[#allocation2 + $0x3b8] sm:$0xff]
        %v478 = vld [vmem:[#allocation2 + $0x3c0] sm:$0xff]
        %v479 = vld [vmem:[#allocation2 + $0x3c8] sm:$0xff]
        %v480 = vld [vmem:[#allocation2 + $0x3d0] sm:$0xff]
        %v481 = vld [vmem:[#allocation2 + $0x3d8] sm:$0xff]
        %v482 = vld [vmem:[#allocation2 + $0x3e0] sm:$0xff]
        %v483 = vld [vmem:[#allocation2 + $0x3e8] sm:$0xff]
        %v484 = vld [vmem:[#allocation2 + $0x3f0] sm:$0xff]
        %v485 = vld [vmem:[#allocation2 + $0x3f8] sm:$0xff]
        %v486 = vld [vmem:[#allocation3] sm:$0xff]
        %v487 = vld [vmem:[#allocation3 + $0x8] sm:$0xff]
        %v488 = vld [vmem:[#allocation3 + $0x10] sm:$0xff]
        %v489 = vld [vmem:[#allocation3 + $0x18] sm:$0xff]
        %v490 = vld [vmem:[#allocation3 + $0x20] sm:$0xff]
        %v491 = vld [vmem:[#allocation3 + $0x28] sm:$0xff]
        %v492 = vld [vmem:[#allocation3 + $0x30] sm:$0xff]
        %v493 = vld [vmem:[#allocation3 + $0x38] sm:$0xff]
        %v494 = vld [vmem:[#allocation3 + $0x40] sm:$0xff]
        %v495 = vld [vmem:[#allocation3 + $0x48] sm:$0xff]
        %v496 = vld [vmem:[#allocation3 + $0x50] sm:$0xff]
        %v497 = vld [vmem:[#allocation3 + $0x58] sm:$0xff]
        %v498 = vld [vmem:[#allocation3 + $0x60] sm:$0xff]
        %v499 = vld [vmem:[#allocation3 + $0x68] sm:$0xff]
        %v500 = vld [vmem:[#allocation3 + $0x70] sm:$0xff]
        %v501 = vld [vmem:[#allocation3 + $0x78] sm:$0xff]
        %v502 = vld [vmem:[#allocation3 + $0x80] sm:$0xff]
        %v503 = vld [vmem:[#allocation3 + $0x88] sm:$0xff]
        %v504 = vld [vmem:[#allocation3 + $0x90] sm:$0xff]
        %v505 = vld [vmem:[#allocation3 + $0x98] sm:$0xff]
        %v506 = vld [vmem:[#allocation3 + $0xa0] sm:$0xff]
        %v507 = vld [vmem:[#allocation3 + $0xa8] sm:$0xff]
        %v508 = vld [vmem:[#allocation3 + $0xb0] sm:$0xff]
        %v509 = vld [vmem:[#allocation3 + $0xb8] sm:$0xff]
        %v510 = vld [vmem:[#allocation3 + $0xc0] sm:$0xff]
        %v511 = vld [vmem:[#allocation3 + $0xc8] sm:$0xff]
        %v512 = vld [vmem:[#allocation3 + $0xd0] sm:$0xff]
        %v513 = vld [vmem:[#allocation3 + $0xd8] sm:$0xff]
        %v514 = vld [vmem:[#allocation3 + $0xe0] sm:$0xff]
        %v515 = vld [vmem:[#allocation3 + $0xe8] sm:$0xff]
        %v516 = vld [vmem:[#allocation3 + $0xf0] sm:$0xff]
        %v517 = vld [vmem:[#allocation3 + $0xf8] sm:$0xff]
        %v518 = vld [vmem:[#allocation3 + $0x100] sm:$0xff]
        %v519 = vld [vmem:[#allocation3 + $0x108] sm:$0xff]
        %v520 = vld [vmem:[#allocation3 + $0x110] sm:$0xff]
        %v521 = vld [vmem:[#allocation3 + $0x118] sm:$0xff]
        %v522 = vld [vmem:[#allocation3 + $0x120] sm:$0xff]
        %v523 = vld [vmem:[#allocation3 + $0x128] sm:$0xff]
        %v524 = vld [vmem:[#allocation3 + $0x130] sm:$0xff]
        %v525 = vld [vmem:[#allocation3 + $0x138] sm:$0xff]
        %v526 = vld [vmem:[#allocation3 + $0x140] sm:$0xff]
        %v527 = vld [vmem:[#allocation3 + $0x148] sm:$0xff]
        %v528 = vld [vmem:[#allocation3 + $0x150] sm:$0xff]
        %v529 = vld [vmem:[#allocation3 + $0x158] sm:$0xff]
        %v530 = vld [vmem:[#allocation3 + $0x160] sm:$0xff]
        %v531 = vld [vmem:[#allocation3 + $0x168] sm:$0xff]
        %v532 = vld [vmem:[#allocation3 + $0x170] sm:$0xff]
        %v533 = vld [vmem:[#allocation3 + $0x178] sm:$0xff]
        %v534 = vld [vmem:[#allocation3 + $0x180] sm:$0xff]
        %v535 = vld [vmem:[#allocation3 + $0x188] sm:$0xff]
        %v536 = vld [vmem:[#allocation3 + $0x190] sm:$0xff]
        %v537 = vld [vmem:[#allocation3 + $0x198] sm:$0xff]
        %v538 = vld [vmem:[#allocation3 + $0x1a0] sm:$0xff]
        %v539 = vld [vmem:[#allocation3 + $0x1a8] sm:$0xff]
        %v540 = vld [vmem:[#allocation3 + $0x1b0] sm:$0xff]
        %v541 = vld [vmem:[#allocation3 + $0x1b8] sm:$0xff]
        %v542 = vld [vmem:[#allocation3 + $0x1c0] sm:$0xff]
        %v543 = vld [vmem:[#allocation3 + $0x1c8] sm:$0xff]
        %v544 = vld [vmem:[#allocation3 + $0x1d0] sm:$0xff]
        %v545 = vld [vmem:[#allocation3 + $0x1d8] sm:$0xff]
        %v546 = vld [vmem:[#allocation3 + $0x1e0] sm:$0xff]
        %v547 = vld [vmem:[#allocation3 + $0x1e8] sm:$0xff]
        %v548 = vld [vmem:[#allocation3 + $0x1f0] sm:$0xff]
        %v549 = vld [vmem:[#allocation3 + $0x1f8] sm:$0xff]
        %v550 = vld [vmem:[#allocation3 + $0x200] sm:$0xff]
        %v551 = vld [vmem:[#allocation3 + $0x208] sm:$0xff]
        %v552 = vld [vmem:[#allocation3 + $0x210] sm:$0xff]
        %v553 = vld [vmem:[#allocation3 + $0x218] sm:$0xff]
        %v554 = vld [vmem:[#allocation3 + $0x220] sm:$0xff]
        %v555 = vld [vmem:[#allocation3 + $0x228] sm:$0xff]
        %v556 = vld [vmem:[#allocation3 + $0x230] sm:$0xff]
        %v557 = vld [vmem:[#allocation3 + $0x238] sm:$0xff]
        %v558 = vld [vmem:[#allocation3 + $0x240] sm:$0xff]
        %v559 = vld [vmem:[#allocation3 + $0x248] sm:$0xff]
        %v560 = vld [vmem:[#allocation3 + $0x250] sm:$0xff]
        %v561 = vld [vmem:[#allocation3 + $0x258] sm:$0xff]
        %v562 = vld [vmem:[#allocation3 + $0x260] sm:$0xff]
        %v563 = vld [vmem:[#allocation3 + $0x268] sm:$0xff]
        %v564 = vld [vmem:[#allocation3 + $0x270] sm:$0xff]
        %v565 = vld [vmem:[#allocation3 + $0x278] sm:$0xff]
        %v566 = vld [vmem:[#allocation3 + $0x280] sm:$0xff]
        %v567 = vld [vmem:[#allocation3 + $0x288] sm:$0xff]
        %v568 = vld [vmem:[#allocation3 + $0x290] sm:$0xff]
        %v569 = vld [vmem:[#allocation3 + $0x298] sm:$0xff]
        %v570 = vld [vmem:[#allocation3 + $0x2a0] sm:$0xff]
        %v571 = vld [vmem:[#allocation3 + $0x2a8] sm:$0xff]
        %v572 = vld [vmem:[#allocation3 + $0x2b0] sm:$0xff]
        %v573 = vld [vmem:[#allocation3 + $0x2b8] sm:$0xff]
        %v574 = vld [vmem:[#allocation3 + $0x2c0] sm:$0xff]
        %v575 = vld [vmem:[#allocation3 + $0x2c8] sm:$0xff]
        %v576 = vld [vmem:[#allocation3 + $0x2d0] sm:$0xff]
        %v577 = vld [vmem:[#allocation3 + $0x2d8] sm:$0xff]
        %v578 = vld [vmem:[#allocation3 + $0x2e0] sm:$0xff]
        %v579 = vld [vmem:[#allocation3 + $0x2e8] sm:$0xff]
        %v580 = vld [vmem:[#allocation3 + $0x2f0] sm:$0xff]
        %v581 = vld [vmem:[#allocation3 + $0x2f8] sm:$0xff]
        %v582 = vld [vmem:[#allocation3 + $0x300] sm:$0xff]
        %v583 = vld [vmem:[#allocation3 + $0x308] sm:$0xff]
        %v584 = vld [vmem:[#allocation3 + $0x310] sm:$0xff]
        %v585 = vld [vmem:[#allocation3 + $0x318] sm:$0xff]
        %v586 = vld [vmem:[#allocation3 + $0x320] sm:$0xff]
        %v587 = vld [vmem:[#allocation3 + $0x328] sm:$0xff]
        %v588 = vld [vmem:[#allocation3 + $0x330] sm:$0xff]
        %v589 = vld [vmem:[#allocation3 + $0x338] sm:$0xff]
        %v590 = vld [vmem:[#allocation3 + $0x340] sm:$0xff]
        %v591 = vld [vmem:[#allocation3 + $0x348] sm:$0xff]
        %v592 = vld [vmem:[#allocation3 + $0x350] sm:$0xff]
        %v593 = vld [vmem:[#allocation3 + $0x358] sm:$0xff]
        %v594 = vld [vmem:[#allocation3 + $0x360] sm:$0xff]
        %v595 = vld [vmem:[#allocation3 + $0x368] sm:$0xff]
        %v596 = vld [vmem:[#allocation3 + $0x370] sm:$0xff]
        %v597 = vld [vmem:[#allocation3 + $0x378] sm:$0xff]
        %v598 = vld [vmem:[#allocation3 + $0x380] sm:$0xff]
        %v599 = vld [vmem:[#allocation3 + $0x388] sm:$0xff]
        %v600 = vld [vmem:[#allocation3 + $0x390] sm:$0xff]
        %v601 = vld [vmem:[#allocation3 + $0x398] sm:$0xff]
        %v602 = vld [vmem:[#allocation3 + $0x3a0] sm:$0xff]
        %v603 = vld [vmem:[#allocation3 + $0x3a8] sm:$0xff]
        %v604 = vld [vmem:[#allocation3 + $0x3b0] sm:$0xff]
        %v605 = vld [vmem:[#allocation3 + $0x3b8] sm:$0xff]
        %v606 = vld [vmem:[#allocation3 + $0x3c0] sm:$0xff]
        %v607 = vld [vmem:[#allocation3 + $0x3c8] sm:$0xff]
        %v608 = vld [vmem:[#allocation3 + $0x3d0] sm:$0xff]
        %v609 = vld [vmem:[#allocation3 + $0x3d8] sm:$0xff]
        %v610 = vld [vmem:[#allocation3 + $0x3e0] sm:$0xff]
        %v611 = vld [vmem:[#allocation3 + $0x3e8] sm:$0xff]
        %v612 = vld [vmem:[#allocation3 + $0x3f0] sm:$0xff]
        %v613 = vld [vmem:[#allocation3 + $0x3f8] sm:$0xff]
        %v614 = vld [vmem:[%s198] sm:$0xff]
        %v615 = vld [vmem:[%s198 + $0x8] sm:$0xff]
        %v616 = vld [vmem:[%s198 + $0x10] sm:$0xff]
        %v617 = vld [vmem:[%s198 + $0x18] sm:$0xff]
        %v618 = vld [vmem:[%s198 + $0x20] sm:$0xff]
        %v619 = vld [vmem:[%s198 + $0x28] sm:$0xff]
        %v620 = vld [vmem:[%s198 + $0x30] sm:$0xff]
        %v621 = vld [vmem:[%s198 + $0x38] sm:$0xff]
        %v622 = vld [vmem:[%s198 + $0x40] sm:$0xff]
        %v623 = vld [vmem:[%s198 + $0x48] sm:$0xff]
        %v624 = vld [vmem:[%s198 + $0x50] sm:$0xff]
        %v625 = vld [vmem:[%s198 + $0x58] sm:$0xff]
        %v626 = vld [vmem:[%s198 + $0x60] sm:$0xff]
        %v627 = vld [vmem:[%s198 + $0x68] sm:$0xff]
        %v628 = vld [vmem:[%s198 + $0x70] sm:$0xff]
        %v629 = vld [vmem:[%s198 + $0x78] sm:$0xff]
        %v630 = vld [vmem:[%s198 + $0x80] sm:$0xff]
        %v631 = vld [vmem:[%s198 + $0x88] sm:$0xff]
        %v632 = vld [vmem:[%s198 + $0x90] sm:$0xff]
        %v633 = vld [vmem:[%s198 + $0x98] sm:$0xff]
        %v634 = vld [vmem:[%s198 + $0xa0] sm:$0xff]
        %v635 = vld [vmem:[%s198 + $0xa8] sm:$0xff]
        %v636 = vld [vmem:[%s198 + $0xb0] sm:$0xff]
        %v637 = vld [vmem:[%s198 + $0xb8] sm:$0xff]
        %v638 = vld [vmem:[%s198 + $0xc0] sm:$0xff]
        %v639 = vld [vmem:[%s198 + $0xc8] sm:$0xff]
        %v640 = vld [vmem:[%s198 + $0xd0] sm:$0xff]
        %v641 = vld [vmem:[%s198 + $0xd8] sm:$0xff]
        %v642 = vld [vmem:[%s198 + $0xe0] sm:$0xff]
        %v643 = vld [vmem:[%s198 + $0xe8] sm:$0xff]
        %v644 = vld [vmem:[%s198 + $0xf0] sm:$0xff]
        %v645 = vld [vmem:[%s198 + $0xf8] sm:$0xff]
        %v646 = vld [vmem:[%s198 + $0x100] sm:$0xff]
        %v647 = vld [vmem:[%s198 + $0x108] sm:$0xff]
        %v648 = vld [vmem:[%s198 + $0x110] sm:$0xff]
        %v649 = vld [vmem:[%s198 + $0x118] sm:$0xff]
        %v650 = vld [vmem:[%s198 + $0x120] sm:$0xff]
        %v651 = vld [vmem:[%s198 + $0x128] sm:$0xff]
        %v652 = vld [vmem:[%s198 + $0x130] sm:$0xff]
        %v653 = vld [vmem:[%s198 + $0x138] sm:$0xff]
        %v654 = vld [vmem:[%s198 + $0x140] sm:$0xff]
        %v655 = vld [vmem:[%s198 + $0x148] sm:$0xff]
        %v656 = vld [vmem:[%s198 + $0x150] sm:$0xff]
        %v657 = vld [vmem:[%s198 + $0x158] sm:$0xff]
        %v658 = vld [vmem:[%s198 + $0x160] sm:$0xff]
        %v659 = vld [vmem:[%s198 + $0x168] sm:$0xff]
        %v660 = vld [vmem:[%s198 + $0x170] sm:$0xff]
        %v661 = vld [vmem:[%s198 + $0x178] sm:$0xff]
        %v662 = vld [vmem:[%s198 + $0x180] sm:$0xff]
        %v663 = vld [vmem:[%s198 + $0x188] sm:$0xff]
        %v664 = vld [vmem:[%s198 + $0x190] sm:$0xff]
        %v665 = vld [vmem:[%s198 + $0x198] sm:$0xff]
        %v666 = vld [vmem:[%s198 + $0x1a0] sm:$0xff]
        %v667 = vld [vmem:[%s198 + $0x1a8] sm:$0xff]
        %v668 = vld [vmem:[%s198 + $0x1b0] sm:$0xff]
        %v669 = vld [vmem:[%s198 + $0x1b8] sm:$0xff]
        %v670 = vld [vmem:[%s198 + $0x1c0] sm:$0xff]
        %v671 = vld [vmem:[%s198 + $0x1c8] sm:$0xff]
        %v672 = vld [vmem:[%s198 + $0x1d0] sm:$0xff]
        %v673 = vld [vmem:[%s198 + $0x1d8] sm:$0xff]
        %v674 = vld [vmem:[%s198 + $0x1e0] sm:$0xff]
        %v675 = vld [vmem:[%s198 + $0x1e8] sm:$0xff]
        %v676 = vld [vmem:[%s198 + $0x1f0] sm:$0xff]
        %v677 = vld [vmem:[%s198 + $0x1f8] sm:$0xff]
        %678 = vmatpush.msra.mxu0 %v644
        %679 = vmatpush.msra.mxu0 %v642
        %680 = vmatpush.msra.mxu0 %v640
        %681 = vmatpush.msra.mxu0 %v638
        %682 = vmatpush.msra.mxu0 %v636
        %683 = vmatpush.msra.mxu0 %v634
        %684 = vmatpush.msra.mxu0 %v632
        %685 = vmatpush.msra.mxu0 %v630
        %686 = vmatpush.msra.mxu0 %v628
        %687 = vmatpush.msra.mxu0 %v626
        %688 = vmatpush.msra.mxu0 %v624
        %689 = vmatpush.msra.mxu0 %v622
        %690 = vmatpush.msra.mxu0 %v620
        %691 = vmatpush.msra.mxu0 %v618
        %692 = vmatpush.msra.mxu0 %v616
        %693 = vmatpush.msra.mxu0 %v614
        %694 = vmatmul.f32.gmra.mxu0 %v486
        %v695 = vpop.f32.mrf.mxu0
        %v696 = vadd.f32 0.0, %v695
        %697 = vmatmul.f32.gmra.mxu0 %v488
        %v698 = vpop.f32.mrf.mxu0
        %v699 = vadd.f32 0.0, %v698
        %700 = vmatmul.f32.gmra.mxu0 %v490
        %v701 = vpop.f32.mrf.mxu0
        %v702 = vadd.f32 0.0, %v701
        %703 = vmatmul.f32.gmra.mxu0 %v492
        %v704 = vpop.f32.mrf.mxu0
        %v705 = vadd.f32 0.0, %v704
        %706 = vmatmul.f32.gmra.mxu0 %v494
        %v707 = vpop.f32.mrf.mxu0
        %v708 = vadd.f32 0.0, %v707
        %709 = vmatmul.f32.gmra.mxu0 %v496
        %v710 = vpop.f32.mrf.mxu0
        %v711 = vadd.f32 0.0, %v710
        %712 = vmatmul.f32.gmra.mxu0 %v498
        %v713 = vpop.f32.mrf.mxu0
        %v714 = vadd.f32 0.0, %v713
        %715 = vmatmul.f32.gmra.mxu0 %v500
        %v716 = vpop.f32.mrf.mxu0
        %v717 = vadd.f32 0.0, %v716
        %718 = vmatmul.f32.gmra.mxu0 %v502
        %v719 = vpop.f32.mrf.mxu0
        %v720 = vadd.f32 0.0, %v719
        %721 = vmatmul.f32.gmra.mxu0 %v504
        %v722 = vpop.f32.mrf.mxu0
        %v723 = vadd.f32 0.0, %v722
        %724 = vmatmul.f32.gmra.mxu0 %v506
        %v725 = vpop.f32.mrf.mxu0
        %v726 = vadd.f32 0.0, %v725
        %727 = vmatmul.f32.gmra.mxu0 %v508
        %v728 = vpop.f32.mrf.mxu0
        %v729 = vadd.f32 0.0, %v728
        %730 = vmatmul.f32.gmra.mxu0 %v510
        %v731 = vpop.f32.mrf.mxu0
        %v732 = vadd.f32 0.0, %v731
        %733 = vmatmul.f32.gmra.mxu0 %v512
        %v734 = vpop.f32.mrf.mxu0
        %v735 = vadd.f32 0.0, %v734
        %736 = vmatmul.f32.gmra.mxu0 %v514
        %v737 = vpop.f32.mrf.mxu0
        %v738 = vadd.f32 0.0, %v737
        %739 = vmatmul.f32.gmra.mxu0 %v516
        %v740 = vpop.f32.mrf.mxu0
        %v741 = vadd.f32 0.0, %v740
        %742 = vmatmul.f32.gmra.mxu0 %v518
        %v743 = vpop.f32.mrf.mxu0
        %v744 = vadd.f32 0.0, %v743
        %745 = vmatmul.f32.gmra.mxu0 %v520
        %v746 = vpop.f32.mrf.mxu0
        %v747 = vadd.f32 0.0, %v746
        %748 = vmatmul.f32.gmra.mxu0 %v522
        %v749 = vpop.f32.mrf.mxu0
        %v750 = vadd.f32 0.0, %v749
        %751 = vmatmul.f32.gmra.mxu0 %v524
        %v752 = vpop.f32.mrf.mxu0
        %v753 = vadd.f32 0.0, %v752
        %754 = vmatmul.f32.gmra.mxu0 %v526
        %v755 = vpop.f32.mrf.mxu0
        %v756 = vadd.f32 0.0, %v755
        %757 = vmatmul.f32.gmra.mxu0 %v528
        %v758 = vpop.f32.mrf.mxu0
        %v759 = vadd.f32 0.0, %v758
        %760 = vmatmul.f32.gmra.mxu0 %v530
        %v761 = vpop.f32.mrf.mxu0
        %v762 = vadd.f32 0.0, %v761
        %763 = vmatmul.f32.gmra.mxu0 %v532
        %v764 = vpop.f32.mrf.mxu0
        %v765 = vadd.f32 0.0, %v764
        %766 = vmatmul.f32.gmra.mxu0 %v534
        %v767 = vpop.f32.mrf.mxu0
        %v768 = vadd.f32 0.0, %v767
        %769 = vmatmul.f32.gmra.mxu0 %v536
        %v770 = vpop.f32.mrf.mxu0
        %v771 = vadd.f32 0.0, %v770
        %772 = vmatmul.f32.gmra.mxu0 %v538
        %v773 = vpop.f32.mrf.mxu0
        %v774 = vadd.f32 0.0, %v773
        %775 = vmatmul.f32.gmra.mxu0 %v540
        %v776 = vpop.f32.mrf.mxu0
        %v777 = vadd.f32 0.0, %v776
        %778 = vmatmul.f32.gmra.mxu0 %v542
        %v779 = vpop.f32.mrf.mxu0
        %v780 = vadd.f32 0.0, %v779
        %781 = vmatmul.f32.gmra.mxu0 %v544
        %v782 = vpop.f32.mrf.mxu0
        %v783 = vadd.f32 0.0, %v782
        %784 = vmatmul.f32.gmra.mxu0 %v546
        %v785 = vpop.f32.mrf.mxu0
        %v786 = vadd.f32 0.0, %v785
        %787 = vmatmul.f32.gmra.mxu0 %v548
        %v788 = vpop.f32.mrf.mxu0
        %v789 = vadd.f32 0.0, %v788
        %790 = vmatmul.f32.gmra.mxu0 %v550
        %v791 = vpop.f32.mrf.mxu0
        %v792 = vadd.f32 0.0, %v791
        %793 = vmatmul.f32.gmra.mxu0 %v552
        %v794 = vpop.f32.mrf.mxu0
        %v795 = vadd.f32 0.0, %v794
        %796 = vmatmul.f32.gmra.mxu0 %v554
        %v797 = vpop.f32.mrf.mxu0
        %v798 = vadd.f32 0.0, %v797
        %799 = vmatmul.f32.gmra.mxu0 %v556
        %v800 = vpop.f32.mrf.mxu0
        %v801 = vadd.f32 0.0, %v800
        %802 = vmatmul.f32.gmra.mxu0 %v558
        %v803 = vpop.f32.mrf.mxu0
        %v804 = vadd.f32 0.0, %v803
        %805 = vmatmul.f32.gmra.mxu0 %v560
        %v806 = vpop.f32.mrf.mxu0
        %v807 = vadd.f32 0.0, %v806
        %808 = vmatmul.f32.gmra.mxu0 %v562
        %v809 = vpop.f32.mrf.mxu0
        %v810 = vadd.f32 0.0, %v809
        %811 = vmatmul.f32.gmra.mxu0 %v564
        %v812 = vpop.f32.mrf.mxu0
        %v813 = vadd.f32 0.0, %v812
        %814 = vmatmul.f32.gmra.mxu0 %v566
        %v815 = vpop.f32.mrf.mxu0
        %v816 = vadd.f32 0.0, %v815
        %817 = vmatmul.f32.gmra.mxu0 %v568
        %v818 = vpop.f32.mrf.mxu0
        %v819 = vadd.f32 0.0, %v818
        %820 = vmatmul.f32.gmra.mxu0 %v570
        %v821 = vpop.f32.mrf.mxu0
        %v822 = vadd.f32 0.0, %v821
        %823 = vmatmul.f32.gmra.mxu0 %v572
        %v824 = vpop.f32.mrf.mxu0
        %v825 = vadd.f32 0.0, %v824
        %826 = vmatmul.f32.gmra.mxu0 %v574
        %v827 = vpop.f32.mrf.mxu0
        %v828 = vadd.f32 0.0, %v827
        %829 = vmatmul.f32.gmra.mxu0 %v576
        %v830 = vpop.f32.mrf.mxu0
        %v831 = vadd.f32 0.0, %v830
        %832 = vmatmul.f32.gmra.mxu0 %v578
        %v833 = vpop.f32.mrf.mxu0
        %v834 = vadd.f32 0.0, %v833
        %835 = vmatmul.f32.gmra.mxu0 %v580
        %v836 = vpop.f32.mrf.mxu0
        %v837 = vadd.f32 0.0, %v836
        %838 = vmatmul.f32.gmra.mxu0 %v582
        %v839 = vpop.f32.mrf.mxu0
        %v840 = vadd.f32 0.0, %v839
        %841 = vmatmul.f32.gmra.mxu0 %v584
        %v842 = vpop.f32.mrf.mxu0
        %v843 = vadd.f32 0.0, %v842
        %844 = vmatmul.f32.gmra.mxu0 %v586
        %v845 = vpop.f32.mrf.mxu0
        %v846 = vadd.f32 0.0, %v845
        %847 = vmatmul.f32.gmra.mxu0 %v588
        %v848 = vpop.f32.mrf.mxu0
        %v849 = vadd.f32 0.0, %v848
        %850 = vmatmul.f32.gmra.mxu0 %v590
        %v851 = vpop.f32.mrf.mxu0
        %v852 = vadd.f32 0.0, %v851
        %853 = vmatmul.f32.gmra.mxu0 %v592
        %v854 = vpop.f32.mrf.mxu0
        %v855 = vadd.f32 0.0, %v854
        %856 = vmatmul.f32.gmra.mxu0 %v594
        %v857 = vpop.f32.mrf.mxu0
        %v858 = vadd.f32 0.0, %v857
        %859 = vmatmul.f32.gmra.mxu0 %v596
        %v860 = vpop.f32.mrf.mxu0
        %v861 = vadd.f32 0.0, %v860
        %862 = vmatmul.f32.gmra.mxu0 %v598
        %v863 = vpop.f32.mrf.mxu0
        %v864 = vadd.f32 0.0, %v863
        %865 = vmatmul.f32.gmra.mxu0 %v600
        %v866 = vpop.f32.mrf.mxu0
        %v867 = vadd.f32 0.0, %v866
        %868 = vmatmul.f32.gmra.mxu0 %v602
        %v869 = vpop.f32.mrf.mxu0
        %v870 = vadd.f32 0.0, %v869
        %871 = vmatmul.f32.gmra.mxu0 %v604
        %v872 = vpop.f32.mrf.mxu0
        %v873 = vadd.f32 0.0, %v872
        %874 = vmatmul.f32.gmra.mxu0 %v606
        %v875 = vpop.f32.mrf.mxu0
        %v876 = vadd.f32 0.0, %v875
        %877 = vmatmul.f32.gmra.mxu0 %v608
        %v878 = vpop.f32.mrf.mxu0
        %v879 = vadd.f32 0.0, %v878
        %880 = vmatmul.f32.gmra.mxu0 %v610
        %v881 = vpop.f32.mrf.mxu0
        %v882 = vadd.f32 0.0, %v881
        %883 = vmatmul.f32.gmra.mxu0 %v612
        %v884 = vpop.f32.mrf.mxu0
        %v885 = vadd.f32 0.0, %v884
        %886 = vdwg.mxu0
        %887 = vmatpush.msra.mxu0 %v676
        %888 = vmatpush.msra.mxu0 %v674
        %889 = vmatpush.msra.mxu0 %v672
        %890 = vmatpush.msra.mxu0 %v670
        %891 = vmatpush.msra.mxu0 %v668
        %892 = vmatpush.msra.mxu0 %v666
        %893 = vmatpush.msra.mxu0 %v664
        %894 = vmatpush.msra.mxu0 %v662
        %895 = vmatpush.msra.mxu0 %v660
        %896 = vmatpush.msra.mxu0 %v658
        %897 = vmatpush.msra.mxu0 %v656
        %898 = vmatpush.msra.mxu0 %v654
        %899 = vmatpush.msra.mxu0 %v652
        %900 = vmatpush.msra.mxu0 %v650
        %901 = vmatpush.msra.mxu0 %v648
        %902 = vmatpush.msra.mxu0 %v646
        %903 = vmatmul.f32.gmra.mxu0 %v487
        %v904 = vpop.f32.mrf.mxu0
        %v905 = vadd.f32 %v696, %v904
        %906 = vmatmul.f32.gmra.mxu0 %v489
        %v907 = vpop.f32.mrf.mxu0
        %v908 = vadd.f32 %v699, %v907
        %909 = vmatmul.f32.gmra.mxu0 %v491
        %v910 = vpop.f32.mrf.mxu0
        %v911 = vadd.f32 %v702, %v910
        %912 = vmatmul.f32.gmra.mxu0 %v493
        %v913 = vpop.f32.mrf.mxu0
        %v914 = vadd.f32 %v705, %v913
        %915 = vmatmul.f32.gmra.mxu0 %v495
        %v916 = vpop.f32.mrf.mxu0
        %v917 = vadd.f32 %v708, %v916
        %918 = vmatmul.f32.gmra.mxu0 %v497
        %v919 = vpop.f32.mrf.mxu0
        %v920 = vadd.f32 %v711, %v919
        %921 = vmatmul.f32.gmra.mxu0 %v499
        %v922 = vpop.f32.mrf.mxu0
        %v923 = vadd.f32 %v714, %v922
        %924 = vmatmul.f32.gmra.mxu0 %v501
        %v925 = vpop.f32.mrf.mxu0
        %v926 = vadd.f32 %v717, %v925
        %927 = vmatmul.f32.gmra.mxu0 %v503
        %v928 = vpop.f32.mrf.mxu0
        %v929 = vadd.f32 %v720, %v928
        %930 = vmatmul.f32.gmra.mxu0 %v505
        %v931 = vpop.f32.mrf.mxu0
        %v932 = vadd.f32 %v723, %v931
        %933 = vmatmul.f32.gmra.mxu0 %v507
        %v934 = vpop.f32.mrf.mxu0
        %v935 = vadd.f32 %v726, %v934
        %936 = vmatmul.f32.gmra.mxu0 %v509
        %v937 = vpop.f32.mrf.mxu0
        %v938 = vadd.f32 %v729, %v937
        %939 = vmatmul.f32.gmra.mxu0 %v511
        %v940 = vpop.f32.mrf.mxu0
        %v941 = vadd.f32 %v732, %v940
        %942 = vmatmul.f32.gmra.mxu0 %v513
        %v943 = vpop.f32.mrf.mxu0
        %v944 = vadd.f32 %v735, %v943
        %945 = vmatmul.f32.gmra.mxu0 %v515
        %v946 = vpop.f32.mrf.mxu0
        %v947 = vadd.f32 %v738, %v946
        %948 = vmatmul.f32.gmra.mxu0 %v517
        %v949 = vpop.f32.mrf.mxu0
        %v950 = vadd.f32 %v741, %v949
        %951 = vmatmul.f32.gmra.mxu0 %v519
        %v952 = vpop.f32.mrf.mxu0
        %v953 = vadd.f32 %v744, %v952
        %954 = vmatmul.f32.gmra.mxu0 %v521
        %v955 = vpop.f32.mrf.mxu0
        %v956 = vadd.f32 %v747, %v955
        %957 = vmatmul.f32.gmra.mxu0 %v523
        %v958 = vpop.f32.mrf.mxu0
        %v959 = vadd.f32 %v750, %v958
        %960 = vmatmul.f32.gmra.mxu0 %v525
        %v961 = vpop.f32.mrf.mxu0
        %v962 = vadd.f32 %v753, %v961
        %963 = vmatmul.f32.gmra.mxu0 %v527
        %v964 = vpop.f32.mrf.mxu0
        %v965 = vadd.f32 %v756, %v964
        %966 = vmatmul.f32.gmra.mxu0 %v529
        %v967 = vpop.f32.mrf.mxu0
        %v968 = vadd.f32 %v759, %v967
        %969 = vmatmul.f32.gmra.mxu0 %v531
        %v970 = vpop.f32.mrf.mxu0
        %v971 = vadd.f32 %v762, %v970
        %972 = vmatmul.f32.gmra.mxu0 %v533
        %v973 = vpop.f32.mrf.mxu0
        %v974 = vadd.f32 %v765, %v973
        %975 = vmatmul.f32.gmra.mxu0 %v535
        %v976 = vpop.f32.mrf.mxu0
        %v977 = vadd.f32 %v768, %v976
        %978 = vmatmul.f32.gmra.mxu0 %v537
        %v979 = vpop.f32.mrf.mxu0
        %v980 = vadd.f32 %v771, %v979
        %981 = vmatmul.f32.gmra.mxu0 %v539
        %v982 = vpop.f32.mrf.mxu0
        %v983 = vadd.f32 %v774, %v982
        %984 = vmatmul.f32.gmra.mxu0 %v541
        %v985 = vpop.f32.mrf.mxu0
        %v986 = vadd.f32 %v777, %v985
        %987 = vmatmul.f32.gmra.mxu0 %v543
        %v988 = vpop.f32.mrf.mxu0
        %v989 = vadd.f32 %v780, %v988
        %990 = vmatmul.f32.gmra.mxu0 %v545
        %v991 = vpop.f32.mrf.mxu0
        %v992 = vadd.f32 %v783, %v991
        %993 = vmatmul.f32.gmra.mxu0 %v547
        %v994 = vpop.f32.mrf.mxu0
        %v995 = vadd.f32 %v786, %v994
        %996 = vmatmul.f32.gmra.mxu0 %v549
        %v997 = vpop.f32.mrf.mxu0
        %v998 = vadd.f32 %v789, %v997
        %999 = vmatmul.f32.gmra.mxu0 %v551
        %v1000 = vpop.f32.mrf.mxu0
        %v1001 = vadd.f32 %v792, %v1000
        %1002 = vmatmul.f32.gmra.mxu0 %v553
        %v1003 = vpop.f32.mrf.mxu0
        %v1004 = vadd.f32 %v795, %v1003
        %1005 = vmatmul.f32.gmra.mxu0 %v555
        %v1006 = vpop.f32.mrf.mxu0
        %v1007 = vadd.f32 %v798, %v1006
        %1008 = vmatmul.f32.gmra.mxu0 %v557
        %v1009 = vpop.f32.mrf.mxu0
        %v1010 = vadd.f32 %v801, %v1009
        %1011 = vmatmul.f32.gmra.mxu0 %v559
        %v1012 = vpop.f32.mrf.mxu0
        %v1013 = vadd.f32 %v804, %v1012
        %1014 = vmatmul.f32.gmra.mxu0 %v561
        %v1015 = vpop.f32.mrf.mxu0
        %v1016 = vadd.f32 %v807, %v1015
        %1017 = vmatmul.f32.gmra.mxu0 %v563
        %v1018 = vpop.f32.mrf.mxu0
        %v1019 = vadd.f32 %v810, %v1018
        %1020 = vmatmul.f32.gmra.mxu0 %v565
        %v1021 = vpop.f32.mrf.mxu0
        %v1022 = vadd.f32 %v813, %v1021
        %1023 = vmatmul.f32.gmra.mxu0 %v567
        %v1024 = vpop.f32.mrf.mxu0
        %v1025 = vadd.f32 %v816, %v1024
        %1026 = vmatmul.f32.gmra.mxu0 %v569
        %v1027 = vpop.f32.mrf.mxu0
        %v1028 = vadd.f32 %v819, %v1027
        %1029 = vmatmul.f32.gmra.mxu0 %v571
        %v1030 = vpop.f32.mrf.mxu0
        %v1031 = vadd.f32 %v822, %v1030
        %1032 = vmatmul.f32.gmra.mxu0 %v573
        %v1033 = vpop.f32.mrf.mxu0
        %v1034 = vadd.f32 %v825, %v1033
        %1035 = vmatmul.f32.gmra.mxu0 %v575
        %v1036 = vpop.f32.mrf.mxu0
        %v1037 = vadd.f32 %v828, %v1036
        %1038 = vmatmul.f32.gmra.mxu0 %v577
        %v1039 = vpop.f32.mrf.mxu0
        %v1040 = vadd.f32 %v831, %v1039
        %1041 = vmatmul.f32.gmra.mxu0 %v579
        %v1042 = vpop.f32.mrf.mxu0
        %v1043 = vadd.f32 %v834, %v1042
        %1044 = vmatmul.f32.gmra.mxu0 %v581
        %v1045 = vpop.f32.mrf.mxu0
        %v1046 = vadd.f32 %v837, %v1045
        %1047 = vmatmul.f32.gmra.mxu0 %v583
        %v1048 = vpop.f32.mrf.mxu0
        %v1049 = vadd.f32 %v840, %v1048
        %1050 = vmatmul.f32.gmra.mxu0 %v585
        %v1051 = vpop.f32.mrf.mxu0
        %v1052 = vadd.f32 %v843, %v1051
        %1053 = vmatmul.f32.gmra.mxu0 %v587
        %v1054 = vpop.f32.mrf.mxu0
        %v1055 = vadd.f32 %v846, %v1054
        %1056 = vmatmul.f32.gmra.mxu0 %v589
        %v1057 = vpop.f32.mrf.mxu0
        %v1058 = vadd.f32 %v849, %v1057
        %1059 = vmatmul.f32.gmra.mxu0 %v591
        %v1060 = vpop.f32.mrf.mxu0
        %v1061 = vadd.f32 %v852, %v1060
        %1062 = vmatmul.f32.gmra.mxu0 %v593
        %v1063 = vpop.f32.mrf.mxu0
        %v1064 = vadd.f32 %v855, %v1063
        %1065 = vmatmul.f32.gmra.mxu0 %v595
        %v1066 = vpop.f32.mrf.mxu0
        %v1067 = vadd.f32 %v858, %v1066
        %1068 = vmatmul.f32.gmra.mxu0 %v597
        %v1069 = vpop.f32.mrf.mxu0
        %v1070 = vadd.f32 %v861, %v1069
        %1071 = vmatmul.f32.gmra.mxu0 %v599
        %v1072 = vpop.f32.mrf.mxu0
        %v1073 = vadd.f32 %v864, %v1072
        %1074 = vmatmul.f32.gmra.mxu0 %v601
        %v1075 = vpop.f32.mrf.mxu0
        %v1076 = vadd.f32 %v867, %v1075
        %1077 = vmatmul.f32.gmra.mxu0 %v603
        %v1078 = vpop.f32.mrf.mxu0
        %v1079 = vadd.f32 %v870, %v1078
        %1080 = vmatmul.f32.gmra.mxu0 %v605
        %v1081 = vpop.f32.mrf.mxu0
        %v1082 = vadd.f32 %v873, %v1081
        %1083 = vmatmul.f32.gmra.mxu0 %v607
        %v1084 = vpop.f32.mrf.mxu0
        %v1085 = vadd.f32 %v876, %v1084
        %1086 = vmatmul.f32.gmra.mxu0 %v609
        %v1087 = vpop.f32.mrf.mxu0
        %v1088 = vadd.f32 %v879, %v1087
        %1089 = vmatmul.f32.gmra.mxu0 %v611
        %v1090 = vpop.f32.mrf.mxu0
        %v1091 = vadd.f32 %v882, %v1090
        %1092 = vmatmul.f32.gmra.mxu0 %v613
        %v1093 = vpop.f32.mrf.mxu0
        %v1094 = vadd.f32 %v885, %v1093
        %1095 = vdwg.mxu0
        %1096 = vmatpush.msra.mxu0 %v645
        %1097 = vmatpush.msra.mxu0 %v643
        %1098 = vmatpush.msra.mxu0 %v641
        %1099 = vmatpush.msra.mxu0 %v639
        %1100 = vmatpush.msra.mxu0 %v637
        %1101 = vmatpush.msra.mxu0 %v635
        %1102 = vmatpush.msra.mxu0 %v633
        %1103 = vmatpush.msra.mxu0 %v631
        %1104 = vmatpush.msra.mxu0 %v629
        %1105 = vmatpush.msra.mxu0 %v627
        %1106 = vmatpush.msra.mxu0 %v625
        %1107 = vmatpush.msra.mxu0 %v623
        %1108 = vmatpush.msra.mxu0 %v621
        %1109 = vmatpush.msra.mxu0 %v619
        %1110 = vmatpush.msra.mxu0 %v617
        %1111 = vmatpush.msra.mxu0 %v615
        %1112 = vmatmul.f32.gmra.mxu0 %v486
        %v1113 = vpop.f32.mrf.mxu0
        %v1114 = vadd.f32 0.0, %v1113
        %1115 = vmatmul.f32.gmra.mxu0 %v488
        %v1116 = vpop.f32.mrf.mxu0
        %v1117 = vadd.f32 0.0, %v1116
        %1118 = vmatmul.f32.gmra.mxu0 %v490
        %v1119 = vpop.f32.mrf.mxu0
        %v1120 = vadd.f32 0.0, %v1119
        %1121 = vmatmul.f32.gmra.mxu0 %v492
        %v1122 = vpop.f32.mrf.mxu0
        %v1123 = vadd.f32 0.0, %v1122
        %1124 = vmatmul.f32.gmra.mxu0 %v494
        %v1125 = vpop.f32.mrf.mxu0
        %v1126 = vadd.f32 0.0, %v1125
        %1127 = vmatmul.f32.gmra.mxu0 %v496
        %v1128 = vpop.f32.mrf.mxu0
        %v1129 = vadd.f32 0.0, %v1128
        %1130 = vmatmul.f32.gmra.mxu0 %v498
        %v1131 = vpop.f32.mrf.mxu0
        %v1132 = vadd.f32 0.0, %v1131
        %1133 = vmatmul.f32.gmra.mxu0 %v500
        %v1134 = vpop.f32.mrf.mxu0
        %v1135 = vadd.f32 0.0, %v1134
        %1136 = vmatmul.f32.gmra.mxu0 %v502
        %v1137 = vpop.f32.mrf.mxu0
        %v1138 = vadd.f32 0.0, %v1137
        %1139 = vmatmul.f32.gmra.mxu0 %v504
        %v1140 = vpop.f32.mrf.mxu0
        %v1141 = vadd.f32 0.0, %v1140
        %1142 = vmatmul.f32.gmra.mxu0 %v506
        %v1143 = vpop.f32.mrf.mxu0
        %v1144 = vadd.f32 0.0, %v1143
        %1145 = vmatmul.f32.gmra.mxu0 %v508
        %v1146 = vpop.f32.mrf.mxu0
        %v1147 = vadd.f32 0.0, %v1146
        %1148 = vmatmul.f32.gmra.mxu0 %v510
        %v1149 = vpop.f32.mrf.mxu0
        %v1150 = vadd.f32 0.0, %v1149
        %1151 = vmatmul.f32.gmra.mxu0 %v512
        %v1152 = vpop.f32.mrf.mxu0
        %v1153 = vadd.f32 0.0, %v1152
        %1154 = vmatmul.f32.gmra.mxu0 %v514
        %v1155 = vpop.f32.mrf.mxu0
        %v1156 = vadd.f32 0.0, %v1155
        %1157 = vmatmul.f32.gmra.mxu0 %v516
        %v1158 = vpop.f32.mrf.mxu0
        %v1159 = vadd.f32 0.0, %v1158
        %1160 = vmatmul.f32.gmra.mxu0 %v518
        %v1161 = vpop.f32.mrf.mxu0
        %v1162 = vadd.f32 0.0, %v1161
        %1163 = vmatmul.f32.gmra.mxu0 %v520
        %v1164 = vpop.f32.mrf.mxu0
        %v1165 = vadd.f32 0.0, %v1164
        %1166 = vmatmul.f32.gmra.mxu0 %v522
        %v1167 = vpop.f32.mrf.mxu0
        %v1168 = vadd.f32 0.0, %v1167
        %1169 = vmatmul.f32.gmra.mxu0 %v524
        %v1170 = vpop.f32.mrf.mxu0
        %v1171 = vadd.f32 0.0, %v1170
        %1172 = vmatmul.f32.gmra.mxu0 %v526
        %v1173 = vpop.f32.mrf.mxu0
        %v1174 = vadd.f32 0.0, %v1173
        %1175 = vmatmul.f32.gmra.mxu0 %v528
        %v1176 = vpop.f32.mrf.mxu0
        %v1177 = vadd.f32 0.0, %v1176
        %1178 = vmatmul.f32.gmra.mxu0 %v530
        %v1179 = vpop.f32.mrf.mxu0
        %v1180 = vadd.f32 0.0, %v1179
        %1181 = vmatmul.f32.gmra.mxu0 %v532
        %v1182 = vpop.f32.mrf.mxu0
        %v1183 = vadd.f32 0.0, %v1182
        %1184 = vmatmul.f32.gmra.mxu0 %v534
        %v1185 = vpop.f32.mrf.mxu0
        %v1186 = vadd.f32 0.0, %v1185
        %1187 = vmatmul.f32.gmra.mxu0 %v536
        %v1188 = vpop.f32.mrf.mxu0
        %v1189 = vadd.f32 0.0, %v1188
        %1190 = vmatmul.f32.gmra.mxu0 %v538
        %v1191 = vpop.f32.mrf.mxu0
        %v1192 = vadd.f32 0.0, %v1191
        %1193 = vmatmul.f32.gmra.mxu0 %v540
        %v1194 = vpop.f32.mrf.mxu0
        %v1195 = vadd.f32 0.0, %v1194
        %1196 = vmatmul.f32.gmra.mxu0 %v542
        %v1197 = vpop.f32.mrf.mxu0
        %v1198 = vadd.f32 0.0, %v1197
        %1199 = vmatmul.f32.gmra.mxu0 %v544
        %v1200 = vpop.f32.mrf.mxu0
        %v1201 = vadd.f32 0.0, %v1200
        %1202 = vmatmul.f32.gmra.mxu0 %v546
        %v1203 = vpop.f32.mrf.mxu0
        %v1204 = vadd.f32 0.0, %v1203
        %1205 = vmatmul.f32.gmra.mxu0 %v548
        %v1206 = vpop.f32.mrf.mxu0
        %v1207 = vadd.f32 0.0, %v1206
        %1208 = vmatmul.f32.gmra.mxu0 %v550
        %v1209 = vpop.f32.mrf.mxu0
        %v1210 = vadd.f32 0.0, %v1209
        %1211 = vmatmul.f32.gmra.mxu0 %v552
        %v1212 = vpop.f32.mrf.mxu0
        %v1213 = vadd.f32 0.0, %v1212
        %1214 = vmatmul.f32.gmra.mxu0 %v554
        %v1215 = vpop.f32.mrf.mxu0
        %v1216 = vadd.f32 0.0, %v1215
        %1217 = vmatmul.f32.gmra.mxu0 %v556
        %v1218 = vpop.f32.mrf.mxu0
        %v1219 = vadd.f32 0.0, %v1218
        %1220 = vmatmul.f32.gmra.mxu0 %v558
        %v1221 = vpop.f32.mrf.mxu0
        %v1222 = vadd.f32 0.0, %v1221
        %1223 = vmatmul.f32.gmra.mxu0 %v560
        %v1224 = vpop.f32.mrf.mxu0
        %v1225 = vadd.f32 0.0, %v1224
        %1226 = vmatmul.f32.gmra.mxu0 %v562
        %v1227 = vpop.f32.mrf.mxu0
        %v1228 = vadd.f32 0.0, %v1227
        %1229 = vmatmul.f32.gmra.mxu0 %v564
        %v1230 = vpop.f32.mrf.mxu0
        %v1231 = vadd.f32 0.0, %v1230
        %1232 = vmatmul.f32.gmra.mxu0 %v566
        %v1233 = vpop.f32.mrf.mxu0
        %v1234 = vadd.f32 0.0, %v1233
        %1235 = vmatmul.f32.gmra.mxu0 %v568
        %v1236 = vpop.f32.mrf.mxu0
        %v1237 = vadd.f32 0.0, %v1236
        %1238 = vmatmul.f32.gmra.mxu0 %v570
        %v1239 = vpop.f32.mrf.mxu0
        %v1240 = vadd.f32 0.0, %v1239
        %1241 = vmatmul.f32.gmra.mxu0 %v572
        %v1242 = vpop.f32.mrf.mxu0
        %v1243 = vadd.f32 0.0, %v1242
        %1244 = vmatmul.f32.gmra.mxu0 %v574
        %v1245 = vpop.f32.mrf.mxu0
        %v1246 = vadd.f32 0.0, %v1245
        %1247 = vmatmul.f32.gmra.mxu0 %v576
        %v1248 = vpop.f32.mrf.mxu0
        %v1249 = vadd.f32 0.0, %v1248
        %1250 = vmatmul.f32.gmra.mxu0 %v578
        %v1251 = vpop.f32.mrf.mxu0
        %v1252 = vadd.f32 0.0, %v1251
        %1253 = vmatmul.f32.gmra.mxu0 %v580
        %v1254 = vpop.f32.mrf.mxu0
        %v1255 = vadd.f32 0.0, %v1254
        %1256 = vmatmul.f32.gmra.mxu0 %v582
        %v1257 = vpop.f32.mrf.mxu0
        %v1258 = vadd.f32 0.0, %v1257
        %1259 = vmatmul.f32.gmra.mxu0 %v584
        %v1260 = vpop.f32.mrf.mxu0
        %v1261 = vadd.f32 0.0, %v1260
        %1262 = vmatmul.f32.gmra.mxu0 %v586
        %v1263 = vpop.f32.mrf.mxu0
        %v1264 = vadd.f32 0.0, %v1263
        %1265 = vmatmul.f32.gmra.mxu0 %v588
        %v1266 = vpop.f32.mrf.mxu0
        %v1267 = vadd.f32 0.0, %v1266
        %1268 = vmatmul.f32.gmra.mxu0 %v590
        %v1269 = vpop.f32.mrf.mxu0
        %v1270 = vadd.f32 0.0, %v1269
        %1271 = vmatmul.f32.gmra.mxu0 %v592
        %v1272 = vpop.f32.mrf.mxu0
        %v1273 = vadd.f32 0.0, %v1272
        %1274 = vmatmul.f32.gmra.mxu0 %v594
        %v1275 = vpop.f32.mrf.mxu0
        %v1276 = vadd.f32 0.0, %v1275
        %1277 = vmatmul.f32.gmra.mxu0 %v596
        %v1278 = vpop.f32.mrf.mxu0
        %v1279 = vadd.f32 0.0, %v1278
        %1280 = vmatmul.f32.gmra.mxu0 %v598
        %v1281 = vpop.f32.mrf.mxu0
        %v1282 = vadd.f32 0.0, %v1281
        %1283 = vmatmul.f32.gmra.mxu0 %v600
        %v1284 = vpop.f32.mrf.mxu0
        %v1285 = vadd.f32 0.0, %v1284
        %1286 = vmatmul.f32.gmra.mxu0 %v602
        %v1287 = vpop.f32.mrf.mxu0
        %v1288 = vadd.f32 0.0, %v1287
        %1289 = vmatmul.f32.gmra.mxu0 %v604
        %v1290 = vpop.f32.mrf.mxu0
        %v1291 = vadd.f32 0.0, %v1290
        %1292 = vmatmul.f32.gmra.mxu0 %v606
        %v1293 = vpop.f32.mrf.mxu0
        %v1294 = vadd.f32 0.0, %v1293
        %1295 = vmatmul.f32.gmra.mxu0 %v608
        %v1296 = vpop.f32.mrf.mxu0
        %v1297 = vadd.f32 0.0, %v1296
        %1298 = vmatmul.f32.gmra.mxu0 %v610
        %v1299 = vpop.f32.mrf.mxu0
        %v1300 = vadd.f32 0.0, %v1299
        %1301 = vmatmul.f32.gmra.mxu0 %v612
        %v1302 = vpop.f32.mrf.mxu0
        %v1303 = vadd.f32 0.0, %v1302
        %1304 = vdwg.mxu0
        %1305 = vmatpush.msra.mxu0 %v677
        %1306 = vmatpush.msra.mxu0 %v675
        %1307 = vmatpush.msra.mxu0 %v673
        %1308 = vmatpush.msra.mxu0 %v671
        %1309 = vmatpush.msra.mxu0 %v669
        %1310 = vmatpush.msra.mxu0 %v667
        %1311 = vmatpush.msra.mxu0 %v665
        %1312 = vmatpush.msra.mxu0 %v663
        %1313 = vmatpush.msra.mxu0 %v661
        %1314 = vmatpush.msra.mxu0 %v659
        %1315 = vmatpush.msra.mxu0 %v657
        %1316 = vmatpush.msra.mxu0 %v655
        %1317 = vmatpush.msra.mxu0 %v653
        %1318 = vmatpush.msra.mxu0 %v651
        %1319 = vmatpush.msra.mxu0 %v649
        %1320 = vmatpush.msra.mxu0 %v647
        %1321 = vmatmul.f32.gmra.mxu0 %v487
        %v1322 = vpop.f32.mrf.mxu0
        %v1323 = vadd.f32 %v1114, %v1322
        %1324 = vmatmul.f32.gmra.mxu0 %v489
        %v1325 = vpop.f32.mrf.mxu0
        %v1326 = vadd.f32 %v1117, %v1325
        %1327 = vmatmul.f32.gmra.mxu0 %v491
        %v1328 = vpop.f32.mrf.mxu0
        %v1329 = vadd.f32 %v1120, %v1328
        %1330 = vmatmul.f32.gmra.mxu0 %v493
        %v1331 = vpop.f32.mrf.mxu0
        %v1332 = vadd.f32 %v1123, %v1331
        %1333 = vmatmul.f32.gmra.mxu0 %v495
        %v1334 = vpop.f32.mrf.mxu0
        %v1335 = vadd.f32 %v1126, %v1334
        %1336 = vmatmul.f32.gmra.mxu0 %v497
        %v1337 = vpop.f32.mrf.mxu0
        %v1338 = vadd.f32 %v1129, %v1337
        %1339 = vmatmul.f32.gmra.mxu0 %v499
        %v1340 = vpop.f32.mrf.mxu0
        %v1341 = vadd.f32 %v1132, %v1340
        %1342 = vmatmul.f32.gmra.mxu0 %v501
        %v1343 = vpop.f32.mrf.mxu0
        %v1344 = vadd.f32 %v1135, %v1343
        %1345 = vmatmul.f32.gmra.mxu0 %v503
        %v1346 = vpop.f32.mrf.mxu0
        %v1347 = vadd.f32 %v1138, %v1346
        %1348 = vmatmul.f32.gmra.mxu0 %v505
        %v1349 = vpop.f32.mrf.mxu0
        %v1350 = vadd.f32 %v1141, %v1349
        %1351 = vmatmul.f32.gmra.mxu0 %v507
        %v1352 = vpop.f32.mrf.mxu0
        %v1353 = vadd.f32 %v1144, %v1352
        %1354 = vmatmul.f32.gmra.mxu0 %v509
        %v1355 = vpop.f32.mrf.mxu0
        %v1356 = vadd.f32 %v1147, %v1355
        %1357 = vmatmul.f32.gmra.mxu0 %v511
        %v1358 = vpop.f32.mrf.mxu0
        %v1359 = vadd.f32 %v1150, %v1358
        %1360 = vmatmul.f32.gmra.mxu0 %v513
        %v1361 = vpop.f32.mrf.mxu0
        %v1362 = vadd.f32 %v1153, %v1361
        %1363 = vmatmul.f32.gmra.mxu0 %v515
        %v1364 = vpop.f32.mrf.mxu0
        %v1365 = vadd.f32 %v1156, %v1364
        %1366 = vmatmul.f32.gmra.mxu0 %v517
        %v1367 = vpop.f32.mrf.mxu0
        %v1368 = vadd.f32 %v1159, %v1367
        %1369 = vmatmul.f32.gmra.mxu0 %v519
        %v1370 = vpop.f32.mrf.mxu0
        %v1371 = vadd.f32 %v1162, %v1370
        %1372 = vmatmul.f32.gmra.mxu0 %v521
        %v1373 = vpop.f32.mrf.mxu0
        %v1374 = vadd.f32 %v1165, %v1373
        %1375 = vmatmul.f32.gmra.mxu0 %v523
        %v1376 = vpop.f32.mrf.mxu0
        %v1377 = vadd.f32 %v1168, %v1376
        %1378 = vmatmul.f32.gmra.mxu0 %v525
        %v1379 = vpop.f32.mrf.mxu0
        %v1380 = vadd.f32 %v1171, %v1379
        %1381 = vmatmul.f32.gmra.mxu0 %v527
        %v1382 = vpop.f32.mrf.mxu0
        %v1383 = vadd.f32 %v1174, %v1382
        %1384 = vmatmul.f32.gmra.mxu0 %v529
        %v1385 = vpop.f32.mrf.mxu0
        %v1386 = vadd.f32 %v1177, %v1385
        %1387 = vmatmul.f32.gmra.mxu0 %v531
        %v1388 = vpop.f32.mrf.mxu0
        %v1389 = vadd.f32 %v1180, %v1388
        %1390 = vmatmul.f32.gmra.mxu0 %v533
        %v1391 = vpop.f32.mrf.mxu0
        %v1392 = vadd.f32 %v1183, %v1391
        %1393 = vmatmul.f32.gmra.mxu0 %v535
        %v1394 = vpop.f32.mrf.mxu0
        %v1395 = vadd.f32 %v1186, %v1394
        %1396 = vmatmul.f32.gmra.mxu0 %v537
        %v1397 = vpop.f32.mrf.mxu0
        %v1398 = vadd.f32 %v1189, %v1397
        %1399 = vmatmul.f32.gmra.mxu0 %v539
        %v1400 = vpop.f32.mrf.mxu0
        %v1401 = vadd.f32 %v1192, %v1400
        %1402 = vmatmul.f32.gmra.mxu0 %v541
        %v1403 = vpop.f32.mrf.mxu0
        %v1404 = vadd.f32 %v1195, %v1403
        %1405 = vmatmul.f32.gmra.mxu0 %v543
        %v1406 = vpop.f32.mrf.mxu0
        %v1407 = vadd.f32 %v1198, %v1406
        %1408 = vmatmul.f32.gmra.mxu0 %v545
        %v1409 = vpop.f32.mrf.mxu0
        %v1410 = vadd.f32 %v1201, %v1409
        %1411 = vmatmul.f32.gmra.mxu0 %v547
        %v1412 = vpop.f32.mrf.mxu0
        %v1413 = vadd.f32 %v1204, %v1412
        %1414 = vmatmul.f32.gmra.mxu0 %v549
        %v1415 = vpop.f32.mrf.mxu0
        %v1416 = vadd.f32 %v1207, %v1415
        %1417 = vmatmul.f32.gmra.mxu0 %v551
        %v1418 = vpop.f32.mrf.mxu0
        %v1419 = vadd.f32 %v1210, %v1418
        %1420 = vmatmul.f32.gmra.mxu0 %v553
        %v1421 = vpop.f32.mrf.mxu0
        %v1422 = vadd.f32 %v1213, %v1421
        %1423 = vmatmul.f32.gmra.mxu0 %v555
        %v1424 = vpop.f32.mrf.mxu0
        %v1425 = vadd.f32 %v1216, %v1424
        %1426 = vmatmul.f32.gmra.mxu0 %v557
        %v1427 = vpop.f32.mrf.mxu0
        %v1428 = vadd.f32 %v1219, %v1427
        %1429 = vmatmul.f32.gmra.mxu0 %v559
        %v1430 = vpop.f32.mrf.mxu0
        %v1431 = vadd.f32 %v1222, %v1430
        %1432 = vmatmul.f32.gmra.mxu0 %v561
        %v1433 = vpop.f32.mrf.mxu0
        %v1434 = vadd.f32 %v1225, %v1433
        %1435 = vmatmul.f32.gmra.mxu0 %v563
        %v1436 = vpop.f32.mrf.mxu0
        %v1437 = vadd.f32 %v1228, %v1436
        %1438 = vmatmul.f32.gmra.mxu0 %v565
        %v1439 = vpop.f32.mrf.mxu0
        %v1440 = vadd.f32 %v1231, %v1439
        %1441 = vmatmul.f32.gmra.mxu0 %v567
        %v1442 = vpop.f32.mrf.mxu0
        %v1443 = vadd.f32 %v1234, %v1442
        %1444 = vmatmul.f32.gmra.mxu0 %v569
        %v1445 = vpop.f32.mrf.mxu0
        %v1446 = vadd.f32 %v1237, %v1445
        %1447 = vmatmul.f32.gmra.mxu0 %v571
        %v1448 = vpop.f32.mrf.mxu0
        %v1449 = vadd.f32 %v1240, %v1448
        %1450 = vmatmul.f32.gmra.mxu0 %v573
        %v1451 = vpop.f32.mrf.mxu0
        %v1452 = vadd.f32 %v1243, %v1451
        %1453 = vmatmul.f32.gmra.mxu0 %v575
        %v1454 = vpop.f32.mrf.mxu0
        %v1455 = vadd.f32 %v1246, %v1454
        %1456 = vmatmul.f32.gmra.mxu0 %v577
        %v1457 = vpop.f32.mrf.mxu0
        %v1458 = vadd.f32 %v1249, %v1457
        %1459 = vmatmul.f32.gmra.mxu0 %v579
        %v1460 = vpop.f32.mrf.mxu0
        %v1461 = vadd.f32 %v1252, %v1460
        %1462 = vmatmul.f32.gmra.mxu0 %v581
        %v1463 = vpop.f32.mrf.mxu0
        %v1464 = vadd.f32 %v1255, %v1463
        %1465 = vmatmul.f32.gmra.mxu0 %v583
        %v1466 = vpop.f32.mrf.mxu0
        %v1467 = vadd.f32 %v1258, %v1466
        %1468 = vmatmul.f32.gmra.mxu0 %v585
        %v1469 = vpop.f32.mrf.mxu0
        %v1470 = vadd.f32 %v1261, %v1469
        %1471 = vmatmul.f32.gmra.mxu0 %v587
        %v1472 = vpop.f32.mrf.mxu0
        %v1473 = vadd.f32 %v1264, %v1472
        %1474 = vmatmul.f32.gmra.mxu0 %v589
        %v1475 = vpop.f32.mrf.mxu0
        %v1476 = vadd.f32 %v1267, %v1475
        %1477 = vmatmul.f32.gmra.mxu0 %v591
        %v1478 = vpop.f32.mrf.mxu0
        %v1479 = vadd.f32 %v1270, %v1478
        %1480 = vmatmul.f32.gmra.mxu0 %v593
        %v1481 = vpop.f32.mrf.mxu0
        %v1482 = vadd.f32 %v1273, %v1481
        %1483 = vmatmul.f32.gmra.mxu0 %v595
        %v1484 = vpop.f32.mrf.mxu0
        %v1485 = vadd.f32 %v1276, %v1484
        %1486 = vmatmul.f32.gmra.mxu0 %v597
        %v1487 = vpop.f32.mrf.mxu0
        %v1488 = vadd.f32 %v1279, %v1487
        %1489 = vmatmul.f32.gmra.mxu0 %v599
        %v1490 = vpop.f32.mrf.mxu0
        %v1491 = vadd.f32 %v1282, %v1490
        %1492 = vmatmul.f32.gmra.mxu0 %v601
        %v1493 = vpop.f32.mrf.mxu0
        %v1494 = vadd.f32 %v1285, %v1493
        %1495 = vmatmul.f32.gmra.mxu0 %v603
        %v1496 = vpop.f32.mrf.mxu0
        %v1497 = vadd.f32 %v1288, %v1496
        %1498 = vmatmul.f32.gmra.mxu0 %v605
        %v1499 = vpop.f32.mrf.mxu0
        %v1500 = vadd.f32 %v1291, %v1499
        %1501 = vmatmul.f32.gmra.mxu0 %v607
        %v1502 = vpop.f32.mrf.mxu0
        %v1503 = vadd.f32 %v1294, %v1502
        %1504 = vmatmul.f32.gmra.mxu0 %v609
        %v1505 = vpop.f32.mrf.mxu0
        %v1506 = vadd.f32 %v1297, %v1505
        %1507 = vmatmul.f32.gmra.mxu0 %v611
        %v1508 = vpop.f32.mrf.mxu0
        %v1509 = vadd.f32 %v1300, %v1508
        %1510 = vmatmul.f32.gmra.mxu0 %v613
        %v1511 = vpop.f32.mrf.mxu0
        %v1512 = vadd.f32 %v1303, %v1511
        %1513 = vdwg.mxu0
        %v1514 = vadd.f32 %v358, %v905
        %v1515 = vadd.f32 %v359, %v1323
        %v1516 = vadd.f32 %v360, %v908
        %v1517 = vadd.f32 %v361, %v1326
        %v1518 = vadd.f32 %v362, %v911
        %v1519 = vadd.f32 %v363, %v1329
        %v1520 = vadd.f32 %v364, %v914
        %v1521 = vadd.f32 %v365, %v1332
        %v1522 = vadd.f32 %v366, %v917
        %v1523 = vadd.f32 %v367, %v1335
        %v1524 = vadd.f32 %v368, %v920
        %v1525 = vadd.f32 %v369, %v1338
        %v1526 = vadd.f32 %v370, %v923
        %v1527 = vadd.f32 %v371, %v1341
        %v1528 = vadd.f32 %v372, %v926
        %v1529 = vadd.f32 %v373, %v1344
        %v1530 = vadd.f32 %v374, %v929
        %v1531 = vadd.f32 %v375, %v1347
        %v1532 = vadd.f32 %v376, %v932
        %v1533 = vadd.f32 %v377, %v1350
        %v1534 = vadd.f32 %v378, %v935
        %v1535 = vadd.f32 %v379, %v1353
        %v1536 = vadd.f32 %v380, %v938
        %v1537 = vadd.f32 %v381, %v1356
        %v1538 = vadd.f32 %v382, %v941
        %v1539 = vadd.f32 %v383, %v1359
        %v1540 = vadd.f32 %v384, %v944
        %v1541 = vadd.f32 %v385, %v1362
        %v1542 = vadd.f32 %v386, %v947
        %v1543 = vadd.f32 %v387, %v1365
        %v1544 = vadd.f32 %v388, %v950
        %v1545 = vadd.f32 %v389, %v1368
        %v1546 = vadd.f32 %v390, %v953
        %v1547 = vadd.f32 %v391, %v1371
        %v1548 = vadd.f32 %v392, %v956
        %v1549 = vadd.f32 %v393, %v1374
        %v1550 = vadd.f32 %v394, %v959
        %v1551 = vadd.f32 %v395, %v1377
        %v1552 = vadd.f32 %v396, %v962
        %v1553 = vadd.f32 %v397, %v1380
        %v1554 = vadd.f32 %v398, %v965
        %v1555 = vadd.f32 %v399, %v1383
        %v1556 = vadd.f32 %v400, %v968
        %v1557 = vadd.f32 %v401, %v1386
        %v1558 = vadd.f32 %v402, %v971
        %v1559 = vadd.f32 %v403, %v1389
        %v1560 = vadd.f32 %v404, %v974
        %v1561 = vadd.f32 %v405, %v1392
        %v1562 = vadd.f32 %v406, %v977
        %v1563 = vadd.f32 %v407, %v1395
        %v1564 = vadd.f32 %v408, %v980
        %v1565 = vadd.f32 %v409, %v1398
        %v1566 = vadd.f32 %v410, %v983
        %v1567 = vadd.f32 %v411, %v1401
        %v1568 = vadd.f32 %v412, %v986
        %v1569 = vadd.f32 %v413, %v1404
        %v1570 = vadd.f32 %v414, %v989
        %v1571 = vadd.f32 %v415, %v1407
        %v1572 = vadd.f32 %v416, %v992
        %v1573 = vadd.f32 %v417, %v1410
        %v1574 = vadd.f32 %v418, %v995
        %v1575 = vadd.f32 %v419, %v1413
        %v1576 = vadd.f32 %v420, %v998
        %v1577 = vadd.f32 %v421, %v1416
        %v1578 = vadd.f32 %v422, %v1001
        %v1579 = vadd.f32 %v423, %v1419
        %v1580 = vadd.f32 %v424, %v1004
        %v1581 = vadd.f32 %v425, %v1422
        %v1582 = vadd.f32 %v426, %v1007
        %v1583 = vadd.f32 %v427, %v1425
        %v1584 = vadd.f32 %v428, %v1010
        %v1585 = vadd.f32 %v429, %v1428
        %v1586 = vadd.f32 %v430, %v1013
        %v1587 = vadd.f32 %v431, %v1431
        %v1588 = vadd.f32 %v432, %v1016
        %v1589 = vadd.f32 %v433, %v1434
        %v1590 = vadd.f32 %v434, %v1019
        %v1591 = vadd.f32 %v435, %v1437
        %v1592 = vadd.f32 %v436, %v1022
        %v1593 = vadd.f32 %v437, %v1440
        %v1594 = vadd.f32 %v438, %v1025
        %v1595 = vadd.f32 %v439, %v1443
        %v1596 = vadd.f32 %v440, %v1028
        %v1597 = vadd.f32 %v441, %v1446
        %v1598 = vadd.f32 %v442, %v1031
        %v1599 = vadd.f32 %v443, %v1449
        %v1600 = vadd.f32 %v444, %v1034
        %v1601 = vadd.f32 %v445, %v1452
        %v1602 = vadd.f32 %v446, %v1037
        %v1603 = vadd.f32 %v447, %v1455
        %v1604 = vadd.f32 %v448, %v1040
        %v1605 = vadd.f32 %v449, %v1458
        %v1606 = vadd.f32 %v450, %v1043
        %v1607 = vadd.f32 %v451, %v1461
        %v1608 = vadd.f32 %v452, %v1046
        %v1609 = vadd.f32 %v453, %v1464
        %v1610 = vadd.f32 %v454, %v1049
        %v1611 = vadd.f32 %v455, %v1467
        %v1612 = vadd.f32 %v456, %v1052
        %v1613 = vadd.f32 %v457, %v1470
        %v1614 = vadd.f32 %v458, %v1055
        %v1615 = vadd.f32 %v459, %v1473
        %v1616 = vadd.f32 %v460, %v1058
        %v1617 = vadd.f32 %v461, %v1476
        %v1618 = vadd.f32 %v462, %v1061
        %v1619 = vadd.f32 %v463, %v1479
        %v1620 = vadd.f32 %v464, %v1064
        %v1621 = vadd.f32 %v465, %v1482
        %v1622 = vadd.f32 %v466, %v1067
        %v1623 = vadd.f32 %v467, %v1485
        %v1624 = vadd.f32 %v468, %v1070
        %v1625 = vadd.f32 %v469, %v1488
        %v1626 = vadd.f32 %v470, %v1073
        %v1627 = vadd.f32 %v471, %v1491
        %v1628 = vadd.f32 %v472, %v1076
        %v1629 = vadd.f32 %v473, %v1494
        %v1630 = vadd.f32 %v474, %v1079
        %v1631 = vadd.f32 %v475, %v1497
        %v1632 = vadd.f32 %v476, %v1082
        %v1633 = vadd.f32 %v477, %v1500
        %v1634 = vadd.f32 %v478, %v1085
        %v1635 = vadd.f32 %v479, %v1503
        %v1636 = vadd.f32 %v480, %v1088
        %v1637 = vadd.f32 %v481, %v1506
        %v1638 = vadd.f32 %v482, %v1091
        %v1639 = vadd.f32 %v483, %v1509
        %v1640 = vadd.f32 %v484, %v1094
        %v1641 = vadd.f32 %v485, %v1512
        %1642 = vst [vmem:[#allocation2] sm:$0xff] %v1514
        %1643 = vst [vmem:[#allocation2 + $0x8] sm:$0xff] %v1515
        %1644 = vst [vmem:[#allocation2 + $0x10] sm:$0xff] %v1516
        %1645 = vst [vmem:[#allocation2 + $0x18] sm:$0xff] %v1517
        %1646 = vst [vmem:[#allocation2 + $0x20] sm:$0xff] %v1518
        %1647 = vst [vmem:[#allocation2 + $0x28] sm:$0xff] %v1519
        %1648 = vst [vmem:[#allocation2 + $0x30] sm:$0xff] %v1520
        %1649 = vst [vmem:[#allocation2 + $0x38] sm:$0xff] %v1521
        %1650 = vst [vmem:[#allocation2 + $0x40] sm:$0xff] %v1522
        %1651 = vst [vmem:[#allocation2 + $0x48] sm:$0xff] %v1523
        %1652 = vst [vmem:[#allocation2 + $0x50] sm:$0xff] %v1524
        %1653 = vst [vmem:[#allocation2 + $0x58] sm:$0xff] %v1525
        %1654 = vst [vmem:[#allocation2 + $0x60] sm:$0xff] %v1526
        %1655 = vst [vmem:[#allocation2 + $0x68] sm:$0xff] %v1527
        %1656 = vst [vmem:[#allocation2 + $0x70] sm:$0xff] %v1528
        %1657 = vst [vmem:[#allocation2 + $0x78] sm:$0xff] %v1529
        %1658 = vst [vmem:[#allocation2 + $0x80] sm:$0xff] %v1530
        %1659 = vst [vmem:[#allocation2 + $0x88] sm:$0xff] %v1531
        %1660 = vst [vmem:[#allocation2 + $0x90] sm:$0xff] %v1532
        %1661 = vst [vmem:[#allocation2 + $0x98] sm:$0xff] %v1533
        %1662 = vst [vmem:[#allocation2 + $0xa0] sm:$0xff] %v1534
        %1663 = vst [vmem:[#allocation2 + $0xa8] sm:$0xff] %v1535
        %1664 = vst [vmem:[#allocation2 + $0xb0] sm:$0xff] %v1536
        %1665 = vst [vmem:[#allocation2 + $0xb8] sm:$0xff] %v1537
        %1666 = vst [vmem:[#allocation2 + $0xc0] sm:$0xff] %v1538
        %1667 = vst [vmem:[#allocation2 + $0xc8] sm:$0xff] %v1539
        %1668 = vst [vmem:[#allocation2 + $0xd0] sm:$0xff] %v1540
        %1669 = vst [vmem:[#allocation2 + $0xd8] sm:$0xff] %v1541
        %1670 = vst [vmem:[#allocation2 + $0xe0] sm:$0xff] %v1542
        %1671 = vst [vmem:[#allocation2 + $0xe8] sm:$0xff] %v1543
        %1672 = vst [vmem:[#allocation2 + $0xf0] sm:$0xff] %v1544
        %1673 = vst [vmem:[#allocation2 + $0xf8] sm:$0xff] %v1545
        %1674 = vst [vmem:[#allocation2 + $0x100] sm:$0xff] %v1546
        %1675 = vst [vmem:[#allocation2 + $0x108] sm:$0xff] %v1547
        %1676 = vst [vmem:[#allocation2 + $0x110] sm:$0xff] %v1548
        %1677 = vst [vmem:[#allocation2 + $0x118] sm:$0xff] %v1549
        %1678 = vst [vmem:[#allocation2 + $0x120] sm:$0xff] %v1550
        %1679 = vst [vmem:[#allocation2 + $0x128] sm:$0xff] %v1551
        %1680 = vst [vmem:[#allocation2 + $0x130] sm:$0xff] %v1552
        %1681 = vst [vmem:[#allocation2 + $0x138] sm:$0xff] %v1553
        %1682 = vst [vmem:[#allocation2 + $0x140] sm:$0xff] %v1554
        %1683 = vst [vmem:[#allocation2 + $0x148] sm:$0xff] %v1555
        %1684 = vst [vmem:[#allocation2 + $0x150] sm:$0xff] %v1556
        %1685 = vst [vmem:[#allocation2 + $0x158] sm:$0xff] %v1557
        %1686 = vst [vmem:[#allocation2 + $0x160] sm:$0xff] %v1558
        %1687 = vst [vmem:[#allocation2 + $0x168] sm:$0xff] %v1559
        %1688 = vst [vmem:[#allocation2 + $0x170] sm:$0xff] %v1560
        %1689 = vst [vmem:[#allocation2 + $0x178] sm:$0xff] %v1561
        %1690 = vst [vmem:[#allocation2 + $0x180] sm:$0xff] %v1562
        %1691 = vst [vmem:[#allocation2 + $0x188] sm:$0xff] %v1563
        %1692 = vst [vmem:[#allocation2 + $0x190] sm:$0xff] %v1564
        %1693 = vst [vmem:[#allocation2 + $0x198] sm:$0xff] %v1565
        %1694 = vst [vmem:[#allocation2 + $0x1a0] sm:$0xff] %v1566
        %1695 = vst [vmem:[#allocation2 + $0x1a8] sm:$0xff] %v1567
        %1696 = vst [vmem:[#allocation2 + $0x1b0] sm:$0xff] %v1568
        %1697 = vst [vmem:[#allocation2 + $0x1b8] sm:$0xff] %v1569
        %1698 = vst [vmem:[#allocation2 + $0x1c0] sm:$0xff] %v1570
        %1699 = vst [vmem:[#allocation2 + $0x1c8] sm:$0xff] %v1571
        %1700 = vst [vmem:[#allocation2 + $0x1d0] sm:$0xff] %v1572
        %1701 = vst [vmem:[#allocation2 + $0x1d8] sm:$0xff] %v1573
        %1702 = vst [vmem:[#allocation2 + $0x1e0] sm:$0xff] %v1574
        %1703 = vst [vmem:[#allocation2 + $0x1e8] sm:$0xff] %v1575
        %1704 = vst [vmem:[#allocation2 + $0x1f0] sm:$0xff] %v1576
        %1705 = vst [vmem:[#allocation2 + $0x1f8] sm:$0xff] %v1577
        %1706 = vst [vmem:[#allocation2 + $0x200] sm:$0xff] %v1578
        %1707 = vst [vmem:[#allocation2 + $0x208] sm:$0xff] %v1579
        %1708 = vst [vmem:[#allocation2 + $0x210] sm:$0xff] %v1580
        %1709 = vst [vmem:[#allocation2 + $0x218] sm:$0xff] %v1581
        %1710 = vst [vmem:[#allocation2 + $0x220] sm:$0xff] %v1582
        %1711 = vst [vmem:[#allocation2 + $0x228] sm:$0xff] %v1583
        %1712 = vst [vmem:[#allocation2 + $0x230] sm:$0xff] %v1584
        %1713 = vst [vmem:[#allocation2 + $0x238] sm:$0xff] %v1585
        %1714 = vst [vmem:[#allocation2 + $0x240] sm:$0xff] %v1586
        %1715 = vst [vmem:[#allocation2 + $0x248] sm:$0xff] %v1587
        %1716 = vst [vmem:[#allocation2 + $0x250] sm:$0xff] %v1588
        %1717 = vst [vmem:[#allocation2 + $0x258] sm:$0xff] %v1589
        %1718 = vst [vmem:[#allocation2 + $0x260] sm:$0xff] %v1590
        %1719 = vst [vmem:[#allocation2 + $0x268] sm:$0xff] %v1591
        %1720 = vst [vmem:[#allocation2 + $0x270] sm:$0xff] %v1592
        %1721 = vst [vmem:[#allocation2 + $0x278] sm:$0xff] %v1593
        %1722 = vst [vmem:[#allocation2 + $0x280] sm:$0xff] %v1594
        %1723 = vst [vmem:[#allocation2 + $0x288] sm:$0xff] %v1595
        %1724 = vst [vmem:[#allocation2 + $0x290] sm:$0xff] %v1596
        %1725 = vst [vmem:[#allocation2 + $0x298] sm:$0xff] %v1597
        %1726 = vst [vmem:[#allocation2 + $0x2a0] sm:$0xff] %v1598
        %1727 = vst [vmem:[#allocation2 + $0x2a8] sm:$0xff] %v1599
        %1728 = vst [vmem:[#allocation2 + $0x2b0] sm:$0xff] %v1600
        %1729 = vst [vmem:[#allocation2 + $0x2b8] sm:$0xff] %v1601
        %1730 = vst [vmem:[#allocation2 + $0x2c0] sm:$0xff] %v1602
        %1731 = vst [vmem:[#allocation2 + $0x2c8] sm:$0xff] %v1603
        %1732 = vst [vmem:[#allocation2 + $0x2d0] sm:$0xff] %v1604
        %1733 = vst [vmem:[#allocation2 + $0x2d8] sm:$0xff] %v1605
        %1734 = vst [vmem:[#allocation2 + $0x2e0] sm:$0xff] %v1606
        %1735 = vst [vmem:[#allocation2 + $0x2e8] sm:$0xff] %v1607
        %1736 = vst [vmem:[#allocation2 + $0x2f0] sm:$0xff] %v1608
        %1737 = vst [vmem:[#allocation2 + $0x2f8] sm:$0xff] %v1609
        %1738 = vst [vmem:[#allocation2 + $0x300] sm:$0xff] %v1610
        %1739 = vst [vmem:[#allocation2 + $0x308] sm:$0xff] %v1611
        %1740 = vst [vmem:[#allocation2 + $0x310] sm:$0xff] %v1612
        %1741 = vst [vmem:[#allocation2 + $0x318] sm:$0xff] %v1613
        %1742 = vst [vmem:[#allocation2 + $0x320] sm:$0xff] %v1614
        %1743 = vst [vmem:[#allocation2 + $0x328] sm:$0xff] %v1615
        %1744 = vst [vmem:[#allocation2 + $0x330] sm:$0xff] %v1616
        %1745 = vst [vmem:[#allocation2 + $0x338] sm:$0xff] %v1617
        %1746 = vst [vmem:[#allocation2 + $0x340] sm:$0xff] %v1618
        %1747 = vst [vmem:[#allocation2 + $0x348] sm:$0xff] %v1619
        %1748 = vst [vmem:[#allocation2 + $0x350] sm:$0xff] %v1620
        %1749 = vst [vmem:[#allocation2 + $0x358] sm:$0xff] %v1621
        %1750 = vst [vmem:[#allocation2 + $0x360] sm:$0xff] %v1622
        %1751 = vst [vmem:[#allocation2 + $0x368] sm:$0xff] %v1623
        %1752 = vst [vmem:[#allocation2 + $0x370] sm:$0xff] %v1624
        %1753 = vst [vmem:[#allocation2 + $0x378] sm:$0xff] %v1625
        %1754 = vst [vmem:[#allocation2 + $0x380] sm:$0xff] %v1626
        %1755 = vst [vmem:[#allocation2 + $0x388] sm:$0xff] %v1627
        %1756 = vst [vmem:[#allocation2 + $0x390] sm:$0xff] %v1628
        %1757 = vst [vmem:[#allocation2 + $0x398] sm:$0xff] %v1629
        %1758 = vst [vmem:[#allocation2 + $0x3a0] sm:$0xff] %v1630
        %1759 = vst [vmem:[#allocation2 + $0x3a8] sm:$0xff] %v1631
        %1760 = vst [vmem:[#allocation2 + $0x3b0] sm:$0xff] %v1632
        %1761 = vst [vmem:[#allocation2 + $0x3b8] sm:$0xff] %v1633
        %1762 = vst [vmem:[#allocation2 + $0x3c0] sm:$0xff] %v1634
        %1763 = vst [vmem:[#allocation2 + $0x3c8] sm:$0xff] %v1635
        %1764 = vst [vmem:[#allocation2 + $0x3d0] sm:$0xff] %v1636
        %1765 = vst [vmem:[#allocation2 + $0x3d8] sm:$0xff] %v1637
        %1766 = vst [vmem:[#allocation2 + $0x3e0] sm:$0xff] %v1638
        %1767 = vst [vmem:[#allocation2 + $0x3e8] sm:$0xff] %v1639
        %1768 = vst [vmem:[#allocation2 + $0x3f0] sm:$0xff] %v1640
        %1769 = vst [vmem:[#allocation2 + $0x3f8] sm:$0xff] %v1641
        // Predicated region
        $region41: #{tpu_custom_call.1} parent=27 // pred_check
          %p1770 = pneg %p226
        $region42: #{tpu_custom_call.1} parent=27 // pred_check_branch
          %1772 = sbr.rel (%p1770) target = $region44
        $region43: #{tpu_custom_call.1} parent=27 // pred_region
          %v1773 = vld [vmem:[#allocation2] sm:$0xff]
          %v1774 = vld [vmem:[#allocation2 + $0x8] sm:$0xff]
          %v1775 = vld [vmem:[#allocation2 + $0x10] sm:$0xff]
          %v1776 = vld [vmem:[#allocation2 + $0x18] sm:$0xff]
          %v1777 = vld [vmem:[#allocation2 + $0x20] sm:$0xff]
          %v1778 = vld [vmem:[#allocation2 + $0x28] sm:$0xff]
          %v1779 = vld [vmem:[#allocation2 + $0x30] sm:$0xff]
          %v1780 = vld [vmem:[#allocation2 + $0x38] sm:$0xff]
          %v1781 = vld [vmem:[#allocation2 + $0x40] sm:$0xff]
          %v1782 = vld [vmem:[#allocation2 + $0x48] sm:$0xff]
          %v1783 = vld [vmem:[#allocation2 + $0x50] sm:$0xff]
          %v1784 = vld [vmem:[#allocation2 + $0x58] sm:$0xff]
          %v1785 = vld [vmem:[#allocation2 + $0x60] sm:$0xff]
          %v1786 = vld [vmem:[#allocation2 + $0x68] sm:$0xff]
          %v1787 = vld [vmem:[#allocation2 + $0x70] sm:$0xff]
          %v1788 = vld [vmem:[#allocation2 + $0x78] sm:$0xff]
          %v1789 = vld [vmem:[#allocation2 + $0x80] sm:$0xff]
          %v1790 = vld [vmem:[#allocation2 + $0x88] sm:$0xff]
          %v1791 = vld [vmem:[#allocation2 + $0x90] sm:$0xff]
          %v1792 = vld [vmem:[#allocation2 + $0x98] sm:$0xff]
          %v1793 = vld [vmem:[#allocation2 + $0xa0] sm:$0xff]
          %v1794 = vld [vmem:[#allocation2 + $0xa8] sm:$0xff]
          %v1795 = vld [vmem:[#allocation2 + $0xb0] sm:$0xff]
          %v1796 = vld [vmem:[#allocation2 + $0xb8] sm:$0xff]
          %v1797 = vld [vmem:[#allocation2 + $0xc0] sm:$0xff]
          %v1798 = vld [vmem:[#allocation2 + $0xc8] sm:$0xff]
          %v1799 = vld [vmem:[#allocation2 + $0xd0] sm:$0xff]
          %v1800 = vld [vmem:[#allocation2 + $0xd8] sm:$0xff]
          %v1801 = vld [vmem:[#allocation2 + $0xe0] sm:$0xff]
          %v1802 = vld [vmem:[#allocation2 + $0xe8] sm:$0xff]
          %v1803 = vld [vmem:[#allocation2 + $0xf0] sm:$0xff]
          %v1804 = vld [vmem:[#allocation2 + $0xf8] sm:$0xff]
          %v1805 = vld [vmem:[#allocation2 + $0x100] sm:$0xff]
          %v1806 = vld [vmem:[#allocation2 + $0x108] sm:$0xff]
          %v1807 = vld [vmem:[#allocation2 + $0x110] sm:$0xff]
          %v1808 = vld [vmem:[#allocation2 + $0x118] sm:$0xff]
          %v1809 = vld [vmem:[#allocation2 + $0x120] sm:$0xff]
          %v1810 = vld [vmem:[#allocation2 + $0x128] sm:$0xff]
          %v1811 = vld [vmem:[#allocation2 + $0x130] sm:$0xff]
          %v1812 = vld [vmem:[#allocation2 + $0x138] sm:$0xff]
          %v1813 = vld [vmem:[#allocation2 + $0x140] sm:$0xff]
          %v1814 = vld [vmem:[#allocation2 + $0x148] sm:$0xff]
          %v1815 = vld [vmem:[#allocation2 + $0x150] sm:$0xff]
          %v1816 = vld [vmem:[#allocation2 + $0x158] sm:$0xff]
          %v1817 = vld [vmem:[#allocation2 + $0x160] sm:$0xff]
          %v1818 = vld [vmem:[#allocation2 + $0x168] sm:$0xff]
          %v1819 = vld [vmem:[#allocation2 + $0x170] sm:$0xff]
          %v1820 = vld [vmem:[#allocation2 + $0x178] sm:$0xff]
          %v1821 = vld [vmem:[#allocation2 + $0x180] sm:$0xff]
          %v1822 = vld [vmem:[#allocation2 + $0x188] sm:$0xff]
          %v1823 = vld [vmem:[#allocation2 + $0x190] sm:$0xff]
          %v1824 = vld [vmem:[#allocation2 + $0x198] sm:$0xff]
          %v1825 = vld [vmem:[#allocation2 + $0x1a0] sm:$0xff]
          %v1826 = vld [vmem:[#allocation2 + $0x1a8] sm:$0xff]
          %v1827 = vld [vmem:[#allocation2 + $0x1b0] sm:$0xff]
          %v1828 = vld [vmem:[#allocation2 + $0x1b8] sm:$0xff]
          %v1829 = vld [vmem:[#allocation2 + $0x1c0] sm:$0xff]
          %v1830 = vld [vmem:[#allocation2 + $0x1c8] sm:$0xff]
          %v1831 = vld [vmem:[#allocation2 + $0x1d0] sm:$0xff]
          %v1832 = vld [vmem:[#allocation2 + $0x1d8] sm:$0xff]
          %v1833 = vld [vmem:[#allocation2 + $0x1e0] sm:$0xff]
          %v1834 = vld [vmem:[#allocation2 + $0x1e8] sm:$0xff]
          %v1835 = vld [vmem:[#allocation2 + $0x1f0] sm:$0xff]
          %v1836 = vld [vmem:[#allocation2 + $0x1f8] sm:$0xff]
          %v1837 = vld [vmem:[#allocation2 + $0x200] sm:$0xff]
          %v1838 = vld [vmem:[#allocation2 + $0x208] sm:$0xff]
          %v1839 = vld [vmem:[#allocation2 + $0x210] sm:$0xff]
          %v1840 = vld [vmem:[#allocation2 + $0x218] sm:$0xff]
          %v1841 = vld [vmem:[#allocation2 + $0x220] sm:$0xff]
          %v1842 = vld [vmem:[#allocation2 + $0x228] sm:$0xff]
          %v1843 = vld [vmem:[#allocation2 + $0x230] sm:$0xff]
          %v1844 = vld [vmem:[#allocation2 + $0x238] sm:$0xff]
          %v1845 = vld [vmem:[#allocation2 + $0x240] sm:$0xff]
          %v1846 = vld [vmem:[#allocation2 + $0x248] sm:$0xff]
          %v1847 = vld [vmem:[#allocation2 + $0x250] sm:$0xff]
          %v1848 = vld [vmem:[#allocation2 + $0x258] sm:$0xff]
          %v1849 = vld [vmem:[#allocation2 + $0x260] sm:$0xff]
          %v1850 = vld [vmem:[#allocation2 + $0x268] sm:$0xff]
          %v1851 = vld [vmem:[#allocation2 + $0x270] sm:$0xff]
          %v1852 = vld [vmem:[#allocation2 + $0x278] sm:$0xff]
          %v1853 = vld [vmem:[#allocation2 + $0x280] sm:$0xff]
          %v1854 = vld [vmem:[#allocation2 + $0x288] sm:$0xff]
          %v1855 = vld [vmem:[#allocation2 + $0x290] sm:$0xff]
          %v1856 = vld [vmem:[#allocation2 + $0x298] sm:$0xff]
          %v1857 = vld [vmem:[#allocation2 + $0x2a0] sm:$0xff]
          %v1858 = vld [vmem:[#allocation2 + $0x2a8] sm:$0xff]
          %v1859 = vld [vmem:[#allocation2 + $0x2b0] sm:$0xff]
          %v1860 = vld [vmem:[#allocation2 + $0x2b8] sm:$0xff]
          %v1861 = vld [vmem:[#allocation2 + $0x2c0] sm:$0xff]
          %v1862 = vld [vmem:[#allocation2 + $0x2c8] sm:$0xff]
          %v1863 = vld [vmem:[#allocation2 + $0x2d0] sm:$0xff]
          %v1864 = vld [vmem:[#allocation2 + $0x2d8] sm:$0xff]
          %v1865 = vld [vmem:[#allocation2 + $0x2e0] sm:$0xff]
          %v1866 = vld [vmem:[#allocation2 + $0x2e8] sm:$0xff]
          %v1867 = vld [vmem:[#allocation2 + $0x2f0] sm:$0xff]
          %v1868 = vld [vmem:[#allocation2 + $0x2f8] sm:$0xff]
          %v1869 = vld [vmem:[#allocation2 + $0x300] sm:$0xff]
          %v1870 = vld [vmem:[#allocation2 + $0x308] sm:$0xff]
          %v1871 = vld [vmem:[#allocation2 + $0x310] sm:$0xff]
          %v1872 = vld [vmem:[#allocation2 + $0x318] sm:$0xff]
          %v1873 = vld [vmem:[#allocation2 + $0x320] sm:$0xff]
          %v1874 = vld [vmem:[#allocation2 + $0x328] sm:$0xff]
          %v1875 = vld [vmem:[#allocation2 + $0x330] sm:$0xff]
          %v1876 = vld [vmem:[#allocation2 + $0x338] sm:$0xff]
          %v1877 = vld [vmem:[#allocation2 + $0x340] sm:$0xff]
          %v1878 = vld [vmem:[#allocation2 + $0x348] sm:$0xff]
          %v1879 = vld [vmem:[#allocation2 + $0x350] sm:$0xff]
          %v1880 = vld [vmem:[#allocation2 + $0x358] sm:$0xff]
          %v1881 = vld [vmem:[#allocation2 + $0x360] sm:$0xff]
          %v1882 = vld [vmem:[#allocation2 + $0x368] sm:$0xff]
          %v1883 = vld [vmem:[#allocation2 + $0x370] sm:$0xff]
          %v1884 = vld [vmem:[#allocation2 + $0x378] sm:$0xff]
          %v1885 = vld [vmem:[#allocation2 + $0x380] sm:$0xff]
          %v1886 = vld [vmem:[#allocation2 + $0x388] sm:$0xff]
          %v1887 = vld [vmem:[#allocation2 + $0x390] sm:$0xff]
          %v1888 = vld [vmem:[#allocation2 + $0x398] sm:$0xff]
          %v1889 = vld [vmem:[#allocation2 + $0x3a0] sm:$0xff]
          %v1890 = vld [vmem:[#allocation2 + $0x3a8] sm:$0xff]
          %v1891 = vld [vmem:[#allocation2 + $0x3b0] sm:$0xff]
          %v1892 = vld [vmem:[#allocation2 + $0x3b8] sm:$0xff]
          %v1893 = vld [vmem:[#allocation2 + $0x3c0] sm:$0xff]
          %v1894 = vld [vmem:[#allocation2 + $0x3c8] sm:$0xff]
          %v1895 = vld [vmem:[#allocation2 + $0x3d0] sm:$0xff]
          %v1896 = vld [vmem:[#allocation2 + $0x3d8] sm:$0xff]
          %v1897 = vld [vmem:[#allocation2 + $0x3e0] sm:$0xff]
          %v1898 = vld [vmem:[#allocation2 + $0x3e8] sm:$0xff]
          %v1899 = vld [vmem:[#allocation2 + $0x3f0] sm:$0xff]
          %v1900 = vld [vmem:[#allocation2 + $0x3f8] sm:$0xff]
          %1901 = vst [vmem:[%s219] sm:$0xff] %v1773
          %1902 = vst [vmem:[%s219 + $0x8] sm:$0xff] %v1774
          %1903 = vst [vmem:[%s219 + $0x10] sm:$0xff] %v1775
          %1904 = vst [vmem:[%s219 + $0x18] sm:$0xff] %v1776
          %1905 = vst [vmem:[%s219 + $0x20] sm:$0xff] %v1777
          %1906 = vst [vmem:[%s219 + $0x28] sm:$0xff] %v1778
          %1907 = vst [vmem:[%s219 + $0x30] sm:$0xff] %v1779
          %1908 = vst [vmem:[%s219 + $0x38] sm:$0xff] %v1780
          %1909 = vst [vmem:[%s219 + $0x40] sm:$0xff] %v1781
          %1910 = vst [vmem:[%s219 + $0x48] sm:$0xff] %v1782
          %1911 = vst [vmem:[%s219 + $0x50] sm:$0xff] %v1783
          %1912 = vst [vmem:[%s219 + $0x58] sm:$0xff] %v1784
          %1913 = vst [vmem:[%s219 + $0x60] sm:$0xff] %v1785
          %1914 = vst [vmem:[%s219 + $0x68] sm:$0xff] %v1786
          %1915 = vst [vmem:[%s219 + $0x70] sm:$0xff] %v1787
          %1916 = vst [vmem:[%s219 + $0x78] sm:$0xff] %v1788
          %1917 = vst [vmem:[%s219 + $0x80] sm:$0xff] %v1789
          %1918 = vst [vmem:[%s219 + $0x88] sm:$0xff] %v1790
          %1919 = vst [vmem:[%s219 + $0x90] sm:$0xff] %v1791
          %1920 = vst [vmem:[%s219 + $0x98] sm:$0xff] %v1792
          %1921 = vst [vmem:[%s219 + $0xa0] sm:$0xff] %v1793
          %1922 = vst [vmem:[%s219 + $0xa8] sm:$0xff] %v1794
          %1923 = vst [vmem:[%s219 + $0xb0] sm:$0xff] %v1795
          %1924 = vst [vmem:[%s219 + $0xb8] sm:$0xff] %v1796
          %1925 = vst [vmem:[%s219 + $0xc0] sm:$0xff] %v1797
          %1926 = vst [vmem:[%s219 + $0xc8] sm:$0xff] %v1798
          %1927 = vst [vmem:[%s219 + $0xd0] sm:$0xff] %v1799
          %1928 = vst [vmem:[%s219 + $0xd8] sm:$0xff] %v1800
          %1929 = vst [vmem:[%s219 + $0xe0] sm:$0xff] %v1801
          %1930 = vst [vmem:[%s219 + $0xe8] sm:$0xff] %v1802
          %1931 = vst [vmem:[%s219 + $0xf0] sm:$0xff] %v1803
          %1932 = vst [vmem:[%s219 + $0xf8] sm:$0xff] %v1804
          %1933 = vst [vmem:[%s219 + $0x100] sm:$0xff] %v1805
          %1934 = vst [vmem:[%s219 + $0x108] sm:$0xff] %v1806
          %1935 = vst [vmem:[%s219 + $0x110] sm:$0xff] %v1807
          %1936 = vst [vmem:[%s219 + $0x118] sm:$0xff] %v1808
          %1937 = vst [vmem:[%s219 + $0x120] sm:$0xff] %v1809
          %1938 = vst [vmem:[%s219 + $0x128] sm:$0xff] %v1810
          %1939 = vst [vmem:[%s219 + $0x130] sm:$0xff] %v1811
          %1940 = vst [vmem:[%s219 + $0x138] sm:$0xff] %v1812
          %1941 = vst [vmem:[%s219 + $0x140] sm:$0xff] %v1813
          %1942 = vst [vmem:[%s219 + $0x148] sm:$0xff] %v1814
          %1943 = vst [vmem:[%s219 + $0x150] sm:$0xff] %v1815
          %1944 = vst [vmem:[%s219 + $0x158] sm:$0xff] %v1816
          %1945 = vst [vmem:[%s219 + $0x160] sm:$0xff] %v1817
          %1946 = vst [vmem:[%s219 + $0x168] sm:$0xff] %v1818
          %1947 = vst [vmem:[%s219 + $0x170] sm:$0xff] %v1819
          %1948 = vst [vmem:[%s219 + $0x178] sm:$0xff] %v1820
          %1949 = vst [vmem:[%s219 + $0x180] sm:$0xff] %v1821
          %1950 = vst [vmem:[%s219 + $0x188] sm:$0xff] %v1822
          %1951 = vst [vmem:[%s219 + $0x190] sm:$0xff] %v1823
          %1952 = vst [vmem:[%s219 + $0x198] sm:$0xff] %v1824
          %1953 = vst [vmem:[%s219 + $0x1a0] sm:$0xff] %v1825
          %1954 = vst [vmem:[%s219 + $0x1a8] sm:$0xff] %v1826
          %1955 = vst [vmem:[%s219 + $0x1b0] sm:$0xff] %v1827
          %1956 = vst [vmem:[%s219 + $0x1b8] sm:$0xff] %v1828
          %1957 = vst [vmem:[%s219 + $0x1c0] sm:$0xff] %v1829
          %1958 = vst [vmem:[%s219 + $0x1c8] sm:$0xff] %v1830
          %1959 = vst [vmem:[%s219 + $0x1d0] sm:$0xff] %v1831
          %1960 = vst [vmem:[%s219 + $0x1d8] sm:$0xff] %v1832
          %1961 = vst [vmem:[%s219 + $0x1e0] sm:$0xff] %v1833
          %1962 = vst [vmem:[%s219 + $0x1e8] sm:$0xff] %v1834
          %1963 = vst [vmem:[%s219 + $0x1f0] sm:$0xff] %v1835
          %1964 = vst [vmem:[%s219 + $0x1f8] sm:$0xff] %v1836
          %1965 = vst [vmem:[%s219 + $0x200] sm:$0xff] %v1837
          %1966 = vst [vmem:[%s219 + $0x208] sm:$0xff] %v1838
          %1967 = vst [vmem:[%s219 + $0x210] sm:$0xff] %v1839
          %1968 = vst [vmem:[%s219 + $0x218] sm:$0xff] %v1840
          %1969 = vst [vmem:[%s219 + $0x220] sm:$0xff] %v1841
          %1970 = vst [vmem:[%s219 + $0x228] sm:$0xff] %v1842
          %1971 = vst [vmem:[%s219 + $0x230] sm:$0xff] %v1843
          %1972 = vst [vmem:[%s219 + $0x238] sm:$0xff] %v1844
          %1973 = vst [vmem:[%s219 + $0x240] sm:$0xff] %v1845
          %1974 = vst [vmem:[%s219 + $0x248] sm:$0xff] %v1846
          %1975 = vst [vmem:[%s219 + $0x250] sm:$0xff] %v1847
          %1976 = vst [vmem:[%s219 + $0x258] sm:$0xff] %v1848
          %1977 = vst [vmem:[%s219 + $0x260] sm:$0xff] %v1849
          %1978 = vst [vmem:[%s219 + $0x268] sm:$0xff] %v1850
          %1979 = vst [vmem:[%s219 + $0x270] sm:$0xff] %v1851
          %1980 = vst [vmem:[%s219 + $0x278] sm:$0xff] %v1852
          %1981 = vst [vmem:[%s219 + $0x280] sm:$0xff] %v1853
          %1982 = vst [vmem:[%s219 + $0x288] sm:$0xff] %v1854
          %1983 = vst [vmem:[%s219 + $0x290] sm:$0xff] %v1855
          %1984 = vst [vmem:[%s219 + $0x298] sm:$0xff] %v1856
          %1985 = vst [vmem:[%s219 + $0x2a0] sm:$0xff] %v1857
          %1986 = vst [vmem:[%s219 + $0x2a8] sm:$0xff] %v1858
          %1987 = vst [vmem:[%s219 + $0x2b0] sm:$0xff] %v1859
          %1988 = vst [vmem:[%s219 + $0x2b8] sm:$0xff] %v1860
          %1989 = vst [vmem:[%s219 + $0x2c0] sm:$0xff] %v1861
          %1990 = vst [vmem:[%s219 + $0x2c8] sm:$0xff] %v1862
          %1991 = vst [vmem:[%s219 + $0x2d0] sm:$0xff] %v1863
          %1992 = vst [vmem:[%s219 + $0x2d8] sm:$0xff] %v1864
          %1993 = vst [vmem:[%s219 + $0x2e0] sm:$0xff] %v1865
          %1994 = vst [vmem:[%s219 + $0x2e8] sm:$0xff] %v1866
          %1995 = vst [vmem:[%s219 + $0x2f0] sm:$0xff] %v1867
          %1996 = vst [vmem:[%s219 + $0x2f8] sm:$0xff] %v1868
          %1997 = vst [vmem:[%s219 + $0x300] sm:$0xff] %v1869
          %1998 = vst [vmem:[%s219 + $0x308] sm:$0xff] %v1870
          %1999 = vst [vmem:[%s219 + $0x310] sm:$0xff] %v1871
          %2000 = vst [vmem:[%s219 + $0x318] sm:$0xff] %v1872
          %2001 = vst [vmem:[%s219 + $0x320] sm:$0xff] %v1873
          %2002 = vst [vmem:[%s219 + $0x328] sm:$0xff] %v1874
          %2003 = vst [vmem:[%s219 + $0x330] sm:$0xff] %v1875
          %2004 = vst [vmem:[%s219 + $0x338] sm:$0xff] %v1876
          %2005 = vst [vmem:[%s219 + $0x340] sm:$0xff] %v1877
          %2006 = vst [vmem:[%s219 + $0x348] sm:$0xff] %v1878
          %2007 = vst [vmem:[%s219 + $0x350] sm:$0xff] %v1879
          %2008 = vst [vmem:[%s219 + $0x358] sm:$0xff] %v1880
          %2009 = vst [vmem:[%s219 + $0x360] sm:$0xff] %v1881
          %2010 = vst [vmem:[%s219 + $0x368] sm:$0xff] %v1882
          %2011 = vst [vmem:[%s219 + $0x370] sm:$0xff] %v1883
          %2012 = vst [vmem:[%s219 + $0x378] sm:$0xff] %v1884
          %2013 = vst [vmem:[%s219 + $0x380] sm:$0xff] %v1885
          %2014 = vst [vmem:[%s219 + $0x388] sm:$0xff] %v1886
          %2015 = vst [vmem:[%s219 + $0x390] sm:$0xff] %v1887
          %2016 = vst [vmem:[%s219 + $0x398] sm:$0xff] %v1888
          %2017 = vst [vmem:[%s219 + $0x3a0] sm:$0xff] %v1889
          %2018 = vst [vmem:[%s219 + $0x3a8] sm:$0xff] %v1890
          %2019 = vst [vmem:[%s219 + $0x3b0] sm:$0xff] %v1891
          %2020 = vst [vmem:[%s219 + $0x3b8] sm:$0xff] %v1892
          %2021 = vst [vmem:[%s219 + $0x3c0] sm:$0xff] %v1893
          %2022 = vst [vmem:[%s219 + $0x3c8] sm:$0xff] %v1894
          %2023 = vst [vmem:[%s219 + $0x3d0] sm:$0xff] %v1895
          %2024 = vst [vmem:[%s219 + $0x3d8] sm:$0xff] %v1896
          %2025 = vst [vmem:[%s219 + $0x3e0] sm:$0xff] %v1897
          %2026 = vst [vmem:[%s219 + $0x3e8] sm:$0xff] %v1898
          %2027 = vst [vmem:[%s219 + $0x3f0] sm:$0xff] %v1899
          %2028 = vst [vmem:[%s219 + $0x3f8] sm:$0xff] %v1900
        $region44: #{tpu_custom_call.1} parent=27 // pred_fallthru
          _
        %s2029 = sand.u32 %s105, 1
        %s2030 = scalar_lea.sflag [#allocation5], %s2029
        %s2031 = sand.u32 %s105, 1
        %s2032 = smul.addr %s2031, 1024
        %s2033 = scalar_lea.vmem [#allocation8], %s2032
        // Predicated region
        $region45: #{tpu_custom_call.1} parent=27 // pred_check
          %p2034 = pneg %p115
        $region46: #{tpu_custom_call.1} parent=27 // pred_check_branch
          %2036 = sbr.rel (%p2034) target = $region48
        $region47: #{tpu_custom_call.1} parent=27 // pred_region
          %s2037 = smul.u32 64, %s25
          %s2038 = smul.u32 2, %s26
          %2040 = vsyncadd %s2030, 0
          %s2041 = smul.addr %s2037, 6
          %s2042 = sadd.s32 %s2038, %s2041
          %s2043 = smul.addr %s2042, 8
          %s2044 = scalar_lea.hbm %s2, %s2043
          %s2045 = sshll.u32 %s2033, 4
          %s2046 = int_to_ptr.vmem [resolvable:$true] %s2045
          %s2047 = sshll.u32 %s2044, 4
          %s2048 = int_to_ptr.hbm [resolvable:$true] %s2047
          %2053 = dma.vmem_to_hbm [thread:$0]  %s2046, 16384, %s2048, %s2030, 256, 768, 16
        $region48: #{tpu_custom_call.1} parent=27 // pred_fallthru
          _
      $region28: #{tpu_custom_call.1} parent=5 // pred_fallthru
        _
      %p2054 = scmp.le.s32.totalorder 2, %s15
      // Predicated region
      $region49: #{tpu_custom_call.1} parent=5 // pred_check
        %p2055 = pneg %p2054
      $region50: #{tpu_custom_call.1} parent=5 // pred_check_branch
        %2057 = sbr.rel (%p2055) target = $region52
      $region51: #{tpu_custom_call.1} parent=5 // pred_region
        %s2058 = ssub.s32 %s15, 2
        // Predicated region
        $region53: #{tpu_custom_call.1} parent=51 // pred_check
          %p2059 = pneg %p121
        $region54: #{tpu_custom_call.1} parent=51 // pred_check_branch
          %2061 = sbr.rel (%p2059) target = $region56
        $region55: #{tpu_custom_call.1} parent=51 // pred_region
          %s2062 = sand.u32 %s106, 1
          %s2063 = scalar_lea.sflag [#allocation5], %s2062
          %s2064 = sand.u32 %s106, 1
          %s2065 = smul.addr %s2064, 1024
          %s2066 = scalar_lea.vmem [#allocation8], %s2065
          %2068 = dma.done %s2063, 16384
        $region56: #{tpu_custom_call.1} parent=51 // pred_fallthru
          _
      $region52: #{tpu_custom_call.1} parent=5 // pred_fallthru
        _
    $region6: #{tpu_custom_call.1} parent=1 // loop_footer
      %s19 = sadd.s32 1, %s15
    $region7: #{tpu_custom_call.1} parent=1 // loop_footer_branch
      %14 = sbr.rel target = $region3
    $region8: #{tpu_custom_call.1} parent=1 // loop_exit
      _
    %2069 = vsyncpa [#allocation4], 1
    %s2070 = scalar_lea.sflag [#allocation4], 1
    %2071 = vsyncpa %s2070, 1
    %2072 = vsyncpa [#allocation7], 1
    %s2073 = scalar_lea.sflag [#allocation7], 1
    %2074 = vsyncpa %s2073, 1
    %2075 = vsyncpa [#allocation5], 1
    %s2076 = scalar_lea.sflag [#allocation5], 1
    %2077 = vsyncpa %s2076, 1

</llo_original>
